<compile_context>
chip_gen: v7x
topology: tpu7x:2x2x1
jax: 0.10.0
libtpu: 0.0.40
codegen_flags: <defaults>
</compile_context>

<pallas_src>
import jax
import jax.numpy as jnp
from jax.experimental import pallas as pl
from jax.experimental.pallas import tpu as pltpu

# ---------------- model hyper-parameters ----------------
N_GENES = 256          # layer1_input
H2 = 128               # layer2_hidden
H3 = 128               # layer3_hidden
BN = 32                # layer4_bottleneck
DROPOUT_P = 0.1

BATCH = 256            # example batch for the demo run

# ---- weight-slab row offsets (all 128 lanes wide, bf16) ----
_W1_R0, _W1_R1 = 0, 256            # fc1: (N_GENES, H2)
_W2_R0, _W2_R1 = 256, 384          # fc2: (H2, H3), pre-scaled by 1/keep
_WMV_R0, _WMV_R1 = 384, 512        # [fc3_mu | fc3_var]: (H3, 64); lanes 64:128 stay ZERO
_W4_R0, _W4_R1 = 512, 544          # fc4: (BN, H3)
_W5_R0, _W5_R1 = 544, 672          # fc5: (H3, H2), pre-scaled by 1/keep
_WSLAB_ROWS = 672

# ---- bias-slab lane offsets (single row, 896 lanes, f32) ----
_B1_L, _B2_L, _BMV_L, _B4_L, _B5_L, _B6_L = 0, 128, 256, 384, 512, 640
_BSLAB_LANES = 896

# ---- random-slab lane offsets (bf16) ----
_M1_L = 0          # 128: keep-mask (0/1) for dropout after fc1
_M2_L = 128        # 128: keep-mask (0/1) for dropout after fc4
_M3_L = 256        # 128: keep-mask (0/1) for dropout after fc5
_EPS_L = 384       # 32 : reparam noise, already * 0.01
_RSLAB_LANES = 512

# ---- merged output lane offsets (f32) ----
_O_REC = 0         # 256: reconstruction
_O_MV = 256        # 64 : [mu | var]
_O_XS = 320        # 32 : x_sample
_O_PAD = 352       # 32 : zero padding (keeps the slab lane-dense at 384)
_OUT_LANES = 384


def _vae_kernel(x_ref, r_ref, w_ref, w6_ref, b_ref, out_ref):
    f32 = jnp.float32
    bf16 = jnp.bfloat16

    x = x_ref[...]                                             # (B, 256) bf16

    # ---------------- encoder ----------------
    h1 = jnp.dot(x, w_ref[_W1_R0:_W1_R1, :], preferred_element_type=f32)
    h1 = jnp.maximum(h1 + b_ref[:, _B1_L:_B1_L + H2], 0.0)
    h1 = h1 * r_ref[:, _M1_L:_M1_L + H2].astype(f32)           # keep-mask; 1/keep folded in w2

    h2 = jnp.dot(h1.astype(bf16), w_ref[_W2_R0:_W2_R1, :], preferred_element_type=f32)
    h2 = jnp.maximum(h2 + b_ref[:, _B2_L:_B2_L + H3], 0.0)

    # merged mu/var projection: one (H3, 64) matmul instead of two (H3, 32)
    mv = jnp.dot(h2.astype(bf16), w_ref[_WMV_R0:_WMV_R1, 0:2 * BN],
                 preferred_element_type=f32)
    mv = mv + b_ref[:, _BMV_L:_BMV_L + 2 * BN]                 # (B, 64) = [mu | var]
    z_mu = mv[:, 0:BN]
    z_var = mv[:, BN:2 * BN]

    # ---- reparametrize (training path); eps already includes the 0.01 ----
    std = jnp.exp(z_var * 0.5)
    x_sample = r_ref[:, _EPS_L:_EPS_L + BN].astype(f32) * std + z_mu   # (B, 32)

    # ---------------- decoder ----------------
    d1 = jnp.dot(x_sample.astype(bf16), w_ref[_W4_R0:_W4_R1, :], preferred_element_type=f32)
    d1 = jnp.maximum(d1 + b_ref[:, _B4_L:_B4_L + H3], 0.0)
    d1 = d1 * r_ref[:, _M2_L:_M2_L + H3].astype(f32)           # keep-mask; 1/keep folded in w5

    d2 = jnp.dot(d1.astype(bf16), w_ref[_W5_R0:_W5_R1, :], preferred_element_type=f32)
    d2 = jnp.maximum(d2 + b_ref[:, _B5_L:_B5_L + H2], 0.0)
    d2 = d2 * r_ref[:, _M3_L:_M3_L + H2].astype(f32)           # keep-mask; 1/keep folded in w6

    recon = jnp.dot(d2.astype(bf16), w6_ref[...], preferred_element_type=f32)
    recon = recon + b_ref[:, _B6_L:_B6_L + N_GENES]

    # ---- single lane-dense output slab: [recon | mu | var | xs | 0] ----
    out_ref[:, _O_REC:_O_REC + N_GENES] = recon
    out_ref[:, _O_MV:_O_MV + 2 * BN] = mv
    out_ref[:, _O_XS:_O_XS + BN] = x_sample
    out_ref[:, _O_PAD:_O_PAD + BN] = jnp.zeros_like(x_sample)


def _pick_tile_b(batch):
    """Per-generation batch tiling.

    Single-TensorCore chips (v2..v6e): largest tile (fewest serial grid steps).
    2-TC chips (v7x, and unknown/future by default): keep grid >= 2 when the
    batch allows so dimension_semantics=("parallel",) shards steps across cores.
    """
    try:
        kind = jax.devices()[0].device_kind.lower()
    except Exception:
        kind = ""
    single_tc = any(t in kind for t in ("v2", "v3", "v4", "v5", "v6"))
    tile = min(batch, 256) if single_tc else min(batch, 128)
    while batch % tile:
        tile //= 2
    return max(tile, 8)


def single_cell_vae_forward(x, packed, rand, tile_b=None):
    """Run the whole VAE forward as one Pallas kernel, tiled over the batch."""
    B, G = x.shape
    assert G == N_GENES
    if tile_b is None:
        tile_b = _pick_tile_b(B)
    assert B % tile_b == 0 and tile_b % 8 == 0
    grid = (B // tile_b,)

    x_bf = x.astype(jnp.bfloat16)   # bf16 into the MXU; halves the x DMA bytes

    flops_per_row = 2 * (N_GENES * H2 + H2 * H3 + H3 * 2 * BN
                         + BN * H3 + H3 * H2 + H2 * N_GENES)

    def _nbytes(a):
        return int(a.size) * a.dtype.itemsize

    bytes_accessed = (_nbytes(x_bf) + _nbytes(rand) + _nbytes(packed["w128"])
                      + _nbytes(packed["w256"]) + _nbytes(packed["bias"])
                      + B * _OUT_LANES * 4)

    merged = pl.pallas_call(
        _vae_kernel,
        out_shape=jax.ShapeDtypeStruct((B, _OUT_LANES), jnp.float32),
        grid=grid,
        in_specs=[
            pl.BlockSpec((tile_b, N_GENES), lambda i: (i, 0)),        # x tile (bf16)
            pl.BlockSpec((tile_b, _RSLAB_LANES), lambda i: (i, 0)),   # masks+eps tile (bf16)
            pl.BlockSpec((_WSLAB_ROWS, 128), lambda i: (0, 0)),       # resident weight slab (bf16)
            pl.BlockSpec((H2, N_GENES), lambda i: (0, 0)),            # resident fc6 weight (bf16)
            pl.BlockSpec((1, _BSLAB_LANES), lambda i: (0, 0)),        # resident bias slab (f32)
        ],
        out_specs=pl.BlockSpec((tile_b, _OUT_LANES), lambda i: (i, 0)),
        compiler_params=pltpu.CompilerParams(
            dimension_semantics=("parallel",)),
        cost_estimate=pl.CostEstimate(
            flops=B * flops_per_row,
            transcendentals=B * BN,
            bytes_accessed=bytes_accessed),
    )(x_bf, rand, packed["w128"], packed["w256"], packed["bias"])

    out = merged[:, _O_REC:_O_REC + N_GENES]
    z_mu = merged[:, _O_MV:_O_MV + BN]
    z_var = merged[:, _O_MV + BN:_O_MV + 2 * BN]
    x_sample = merged[:, _O_XS:_O_XS + BN]
    return out, x_sample, z_mu, z_var


def init_params(key):
    """Deterministic init. Linear weights stored as [in, out]; biases as [1, out]."""
    def linear(key, fan_in, fan_out):
        kw, kb = jax.random.split(key)
        bound = 1.0 / jnp.sqrt(jnp.float32(fan_in))
        w = jax.random.uniform(kw, (fan_in, fan_out), jnp.float32, -bound, bound)
        b = jax.random.uniform(kb, (1, fan_out), jnp.float32, -bound, bound)
        return w, b

    keys = jax.random.split(key, 7)
    p = {}
    p["w1"], p["b1"] = linear(keys[0], N_GENES, H2)
    p["w2"], p["b2"] = linear(keys[1], H2, H3)
    p["wmu"], p["bmu"] = linear(keys[2], H3, BN)
    p["wvar"], p["bvar"] = linear(keys[3], H3, BN)
    p["w4"], p["b4"] = linear(keys[4], BN, H3)
    p["w5"], p["b5"] = linear(keys[5], H3, H2)
    p["w6"], p["b6"] = linear(keys[6], H2, N_GENES)
    return p


def pack_params(p, dropout_p=DROPOUT_P):
    """One-time host-side packing: bf16 weight slabs + f32 bias slab, with the
    inverted-dropout 1/(1-p) scale folded into w2/w5/w6."""
    inv_keep = 1.0 / (1.0 - dropout_p)

    w128 = jnp.zeros((_WSLAB_ROWS, 128), jnp.float32)
    w128 = w128.at[_W1_R0:_W1_R1, :].set(p["w1"])
    w128 = w128.at[_W2_R0:_W2_R1, :].set(p["w2"] * inv_keep)    # fold dropout-1 scale
    w128 = w128.at[_WMV_R0:_WMV_R1, 0:BN].set(p["wmu"])
    w128 = w128.at[_WMV_R0:_WMV_R1, BN:2 * BN].set(p["wvar"])   # lanes 64:128 stay zero
    w128 = w128.at[_W4_R0:_W4_R1, :].set(p["w4"])
    w128 = w128.at[_W5_R0:_W5_R1, :].set(p["w5"] * inv_keep)    # fold dropout-2 scale
    w128 = w128.astype(jnp.bfloat16)

    w256 = (p["w6"] * inv_keep).astype(jnp.bfloat16)            # fold dropout-3 scale

    bias = jnp.zeros((1, _BSLAB_LANES), jnp.float32)
    bias = bias.at[:, _B1_L:_B1_L + H2].set(p["b1"])
    bias = bias.at[:, _B2_L:_B2_L + H3].set(p["b2"])
    bias = bias.at[:, _BMV_L:_BMV_L + BN].set(p["bmu"])
    bias = bias.at[:, _BMV_L + BN:_BMV_L + 2 * BN].set(p["bvar"])
    bias = bias.at[:, _B4_L:_B4_L + H3].set(p["b4"])
    bias = bias.at[:, _B5_L:_B5_L + H2].set(p["b5"])
    bias = bias.at[:, _B6_L:_B6_L + N_GENES].set(p["b6"])

    return {"w128": w128, "w256": w256, "bias": bias}


def make_rand_slab(u1, u2, u3, eps, dropout_p=DROPOUT_P):
    """Pack dropout keep-masks (exact 0/1 in bf16) and reparam eps into one slab."""
    B = u1.shape[0]
    rand = jnp.zeros((B, _RSLAB_LANES), jnp.bfloat16)
    rand = rand.at[:, _M1_L:_M1_L + H2].set((u1 >= dropout_p).astype(jnp.bfloat16))
    rand = rand.at[:, _M2_L:_M2_L + H3].set((u2 >= dropout_p).astype(jnp.bfloat16))
    rand = rand.at[:, _M3_L:_M3_L + H2].set((u3 >= dropout_p).astype(jnp.bfloat16))
    rand = rand.at[:, _EPS_L:_EPS_L + BN].set(eps.astype(jnp.bfloat16))
    return rand


def matched_reference(x, packed, rand):
    """Plain-JAX reference mirroring the kernel's numerics exactly:
    bf16 dot operands, f32 accumulate, folded dropout scale, 0/1 keep-masks."""
    bf16, f32 = jnp.bfloat16, jnp.float32
    w, w6, b = packed["w128"], packed["w256"], packed["bias"][0]
    dot = lambda a, wt: jnp.dot(a.astype(bf16), wt, preferred_element_type=f32)

    m1 = rand[:, _M1_L:_M1_L + H2].astype(f32)
    m2 = rand[:, _M2_L:_M2_L + H3].astype(f32)
    m3 = rand[:, _M3_L:_M3_L + H2].astype(f32)
    eps = rand[:, _EPS_L:_EPS_L + BN].astype(f32)

    h1 = jnp.maximum(dot(x, w[_W1_R0:_W1_R1]) + b[_B1_L:_B1_L + H2], 0.0) * m1
    h2 = jnp.maximum(dot(h1, w[_W2_R0:_W2_R1]) + b[_B2_L:_B2_L + H3], 0.0)
    mv = dot(h2, w[_WMV_R0:_WMV_R1, 0:2 * BN]) + b[_BMV_L:_BMV_L + 2 * BN]
    mu, var = mv[:, :BN], mv[:, BN:]
    xs = eps * jnp.exp(var * 0.5) + mu
    d1 = jnp.maximum(dot(xs, w[_W4_R0:_W4_R1]) + b[_B4_L:_B4_L + H3], 0.0) * m2
    d2 = jnp.maximum(dot(d1, w[_W5_R0:_W5_R1]) + b[_B5_L:_B5_L + H2], 0.0) * m3
    out = dot(d2, w6) + b[_B6_L:_B6_L + N_GENES]
    return out, xs, mu, var


def module_reference(x, p, u1, u2, u3, eps, dp=DROPOUT_P):
    """Original module math (training mode) with the unfolded f32 parameters."""
    keep = 1.0 - dp
    h1 = jnp.maximum(x @ p["w1"] + p["b1"], 0.0)
    h1 = jnp.where(u1 >= dp, h1 / keep, 0.0)
    h2 = jnp.maximum(h1 @ p["w2"] + p["b2"], 0.0)
    mu = h2 @ p["wmu"] + p["bmu"]
    var = h2 @ p["wvar"] + p["bvar"]
    xs = eps * jnp.exp(var / 2) + mu          # eps already includes the 0.01 factor
    d1 = jnp.maximum(xs @ p["w4"] + p["b4"], 0.0)
    d1 = jnp.where(u2 >= dp, d1 / keep, 0.0)
    d2 = jnp.maximum(d1 @ p["w5"] + p["b5"], 0.0)
    d2 = jnp.where(u3 >= dp, d2 / keep, 0.0)
    out = d2 @ p["w6"] + p["b6"]
    return out, xs, mu, var


if __name__ == "__main__":
    key = jax.random.PRNGKey(0)
    k_param, k_x, k_eps, k_u1, k_u2, k_u3 = jax.random.split(key, 6)

    params = init_params(k_param)
    packed = pack_params(params, DROPOUT_P)

    x = jax.random.normal(k_x, (BATCH, N_GENES), jnp.float32)

    # deterministic "randomness": dropout uniforms + reparam noise (0.01 folded in)
    u1 = jax.random.uniform(k_u1, (BATCH, H2), jnp.float32)
    u2 = jax.random.uniform(k_u2, (BATCH, H3), jnp.float32)
    u3 = jax.random.uniform(k_u3, (BATCH, H2), jnp.float32)
    eps = jax.random.normal(k_eps, (BATCH, BN), jnp.float32) * 0.01

    rand = make_rand_slab(u1, u2, u3, eps, DROPOUT_P)

    out, xs, mu, var = single_cell_vae_forward(x, packed, rand)
    jax.block_until_ready((out, xs, mu, var))

    # 1) Tight check against a plain-JAX reference that mirrors the kernel's
    #    bf16-MXU numerics (kernel-logic correctness).
    r_out, r_xs, r_mu, r_var = matched_reference(x, packed, rand)
    assert jnp.allclose(mu, r_mu, atol=2e-3, rtol=2e-3)
    assert jnp.allclose(var, r_var, atol=2e-3, rtol=2e-3)
    assert jnp.allclose(xs, r_xs, atol=2e-3, rtol=2e-3)
    assert jnp.allclose(out, r_out, atol=2e-3, rtol=2e-3)

    # 2) Loose sanity check against the original-module f32 math (the bf16 MXU
    #    path is an approximation, so tolerances are wide).
    eps_used = rand[:, _EPS_L:_EPS_L + BN].astype(jnp.float32)
    m_out, m_xs, m_mu, m_var = module_reference(x, params, u1, u2, u3, eps_used)
    assert jnp.allclose(mu, m_mu, atol=5e-2, rtol=5e-2)
    assert jnp.allclose(var, m_var, atol=5e-2, rtol=5e-2)
    assert jnp.allclose(xs, m_xs, atol=5e-2, rtol=5e-2)
    assert jnp.allclose(out, m_out, atol=5e-2, rtol=5e-2)

    print("KERNEL_OK")
</pallas_src>

<mosaic_0001>
module attributes {stable_mosaic.version = 11 : i64} {
  func.func @_vae_kernel(%arg0: i32, %arg1: memref<128x256xbf16, #tpu.memory_space<vmem>>, %arg2: memref<128x512xbf16, #tpu.memory_space<vmem>>, %arg3: memref<672x128xbf16, #tpu.memory_space<vmem>>, %arg4: memref<128x256xbf16, #tpu.memory_space<vmem>>, %arg5: memref<1x896xf32, #tpu.memory_space<vmem>>, %arg6: memref<128x384xf32, #tpu.memory_space<vmem>>) attributes {dimension_semantics = [#tpu.dimension_semantics<parallel>], iteration_bounds = array<i64: 2>, scalar_prefetch = 0 : i64, scratch_operands = 0 : i64, tpu.core_type = #tpu.core_type<tc>, window_params = [{transform_indices = @transform_0, window_bounds = array<i64: 128, 256>}, {transform_indices = @transform_1, window_bounds = array<i64: 128, 512>}, {pipeline_mode = #tpu.pipeline_mode<synchronous>, transform_indices = @transform_2, window_bounds = array<i64: 672, 128>}, {pipeline_mode = #tpu.pipeline_mode<synchronous>, transform_indices = @transform_3, window_bounds = array<i64: 128, 256>}, {pipeline_mode = #tpu.pipeline_mode<synchronous>, transform_indices = @transform_4, window_bounds = array<i64: 1, 896>}, {transform_indices = @transform_5, window_bounds = array<i64: 128, 384>}]} {
    %c0 = arith.constant 0 : index
    %c0_0 = arith.constant 0 : index
    %0 = vector.load %arg1[%c0, %c0_0] : memref<128x256xbf16, #tpu.memory_space<vmem>>, vector<128x256xbf16>
    %c0_1 = arith.constant 0 : index
    %c0_2 = arith.constant 0 : index
    %1 = vector.load %arg3[%c0_1, %c0_2] : memref<672x128xbf16, #tpu.memory_space<vmem>>, vector<256x128xbf16>
    %cst = arith.constant dense<0.000000e+00> : vector<128x128xf32>
    %2 = tpu.matmul %0, %1, %cst {dimension_numbers = #tpu.dot_dimension_numbers<[1], [0], [0], [1], [0, 0, 1, 1], [], []>} : vector<128x256xbf16>, vector<256x128xbf16>, vector<128x128xf32> -> vector<128x128xf32>
    %c0_3 = arith.constant 0 : index
    %c0_4 = arith.constant 0 : index
    %3 = vector.load %arg5[%c0_3, %c0_4] : memref<1x896xf32, #tpu.memory_space<vmem>>, vector<1x128xf32>
    %4 = vector.broadcast %3 : vector<1x128xf32> to vector<128x128xf32>
    %5 = arith.addf %2, %4 : vector<128x128xf32>
    %cst_5 = arith.constant 0.000000e+00 : f32
    %6 = vector.broadcast %cst_5 : f32 to vector<128x128xf32>
    %7 = arith.maximumf %5, %6 : vector<128x128xf32>
    %c0_6 = arith.constant 0 : index
    %c0_7 = arith.constant 0 : index
    %8 = vector.load %arg2[%c0_6, %c0_7] : memref<128x512xbf16, #tpu.memory_space<vmem>>, vector<128x128xbf16>
    %9 = arith.extf %8 : vector<128x128xbf16> to vector<128x128xf32>
    %10 = arith.mulf %7, %9 : vector<128x128xf32>
    %11 = arith.truncf %10 : vector<128x128xf32> to vector<128x128xbf16>
    %c256 = arith.constant 256 : index
    %c0_8 = arith.constant 0 : index
    %12 = vector.load %arg3[%c256, %c0_8] : memref<672x128xbf16, #tpu.memory_space<vmem>>, vector<128x128xbf16>
    %cst_9 = arith.constant dense<0.000000e+00> : vector<128x128xf32>
    %13 = tpu.matmul %11, %12, %cst_9 {dimension_numbers = #tpu.dot_dimension_numbers<[1], [0], [0], [1], [0, 0, 1, 1], [], []>} : vector<128x128xbf16>, vector<128x128xbf16>, vector<128x128xf32> -> vector<128x128xf32>
    %c0_10 = arith.constant 0 : index
    %c128 = arith.constant 128 : index
    %14 = vector.load %arg5[%c0_10, %c128] : memref<1x896xf32, #tpu.memory_space<vmem>>, vector<1x128xf32>
    %15 = vector.broadcast %14 : vector<1x128xf32> to vector<128x128xf32>
    %16 = arith.addf %13, %15 : vector<128x128xf32>
    %cst_11 = arith.constant 0.000000e+00 : f32
    %17 = vector.broadcast %cst_11 : f32 to vector<128x128xf32>
    %18 = arith.maximumf %16, %17 : vector<128x128xf32>
    %19 = arith.truncf %18 : vector<128x128xf32> to vector<128x128xbf16>
    %c384 = arith.constant 384 : index
    %c0_12 = arith.constant 0 : index
    %20 = vector.load %arg3[%c384, %c0_12] : memref<672x128xbf16, #tpu.memory_space<vmem>>, vector<128x64xbf16>
    %cst_13 = arith.constant dense<0.000000e+00> : vector<128x64xf32>
    %21 = tpu.matmul %19, %20, %cst_13 {dimension_numbers = #tpu.dot_dimension_numbers<[1], [0], [0], [1], [0, 0, 1, 1], [], []>} : vector<128x128xbf16>, vector<128x64xbf16>, vector<128x64xf32> -> vector<128x64xf32>
    %c0_14 = arith.constant 0 : index
    %c256_15 = arith.constant 256 : index
    %22 = vector.load %arg5[%c0_14, %c256_15] : memref<1x896xf32, #tpu.memory_space<vmem>>, vector<1x64xf32>
    %23 = vector.broadcast %22 : vector<1x64xf32> to vector<128x64xf32>
    %24 = arith.addf %21, %23 : vector<128x64xf32>
    %25 = vector.extract_strided_slice %24 {offsets = [0, 0], sizes = [128, 32], strides = [1, 1]} : vector<128x64xf32> to vector<128x32xf32>
    %26 = vector.extract_strided_slice %24 {offsets = [0, 32], sizes = [128, 32], strides = [1, 1]} : vector<128x64xf32> to vector<128x32xf32>
    %cst_16 = arith.constant 5.000000e-01 : f32
    %27 = vector.broadcast %cst_16 : f32 to vector<128x32xf32>
    %28 = arith.mulf %26, %27 : vector<128x32xf32>
    %29 = math.exp %28 : vector<128x32xf32>
    %c0_17 = arith.constant 0 : index
    %c384_18 = arith.constant 384 : index
    %30 = vector.load %arg2[%c0_17, %c384_18] : memref<128x512xbf16, #tpu.memory_space<vmem>>, vector<128x32xbf16>
    %31 = arith.extf %30 : vector<128x32xbf16> to vector<128x32xf32>
    %32 = arith.mulf %31, %29 : vector<128x32xf32>
    %33 = arith.addf %32, %25 : vector<128x32xf32>
    %34 = arith.truncf %33 : vector<128x32xf32> to vector<128x32xbf16>
    %c512 = arith.constant 512 : index
    %c0_19 = arith.constant 0 : index
    %35 = vector.load %arg3[%c512, %c0_19] : memref<672x128xbf16, #tpu.memory_space<vmem>>, vector<32x128xbf16>
    %cst_20 = arith.constant dense<0.000000e+00> : vector<128x128xf32>
    %36 = tpu.matmul %34, %35, %cst_20 {dimension_numbers = #tpu.dot_dimension_numbers<[1], [0], [0], [1], [0, 0, 1, 1], [], []>} : vector<128x32xbf16>, vector<32x128xbf16>, vector<128x128xf32> -> vector<128x128xf32>
    %c0_21 = arith.constant 0 : index
    %c384_22 = arith.constant 384 : index
    %37 = vector.load %arg5[%c0_21, %c384_22] : memref<1x896xf32, #tpu.memory_space<vmem>>, vector<1x128xf32>
    %38 = vector.broadcast %37 : vector<1x128xf32> to vector<128x128xf32>
    %39 = arith.addf %36, %38 : vector<128x128xf32>
    %cst_23 = arith.constant 0.000000e+00 : f32
    %40 = vector.broadcast %cst_23 : f32 to vector<128x128xf32>
    %41 = arith.maximumf %39, %40 : vector<128x128xf32>
    %c0_24 = arith.constant 0 : index
    %c128_25 = arith.constant 128 : index
    %42 = vector.load %arg2[%c0_24, %c128_25] : memref<128x512xbf16, #tpu.memory_space<vmem>>, vector<128x128xbf16>
    %43 = arith.extf %42 : vector<128x128xbf16> to vector<128x128xf32>
    %44 = arith.mulf %41, %43 : vector<128x128xf32>
    %45 = arith.truncf %44 : vector<128x128xf32> to vector<128x128xbf16>
    %c544 = arith.constant 544 : index
    %c0_26 = arith.constant 0 : index
    %46 = vector.load %arg3[%c544, %c0_26] : memref<672x128xbf16, #tpu.memory_space<vmem>>, vector<128x128xbf16>
    %cst_27 = arith.constant dense<0.000000e+00> : vector<128x128xf32>
    %47 = tpu.matmul %45, %46, %cst_27 {dimension_numbers = #tpu.dot_dimension_numbers<[1], [0], [0], [1], [0, 0, 1, 1], [], []>} : vector<128x128xbf16>, vector<128x128xbf16>, vector<128x128xf32> -> vector<128x128xf32>
    %c0_28 = arith.constant 0 : index
    %c512_29 = arith.constant 512 : index
    %48 = vector.load %arg5[%c0_28, %c512_29] : memref<1x896xf32, #tpu.memory_space<vmem>>, vector<1x128xf32>
    %49 = vector.broadcast %48 : vector<1x128xf32> to vector<128x128xf32>
    %50 = arith.addf %47, %49 : vector<128x128xf32>
    %cst_30 = arith.constant 0.000000e+00 : f32
    %51 = vector.broadcast %cst_30 : f32 to vector<128x128xf32>
    %52 = arith.maximumf %50, %51 : vector<128x128xf32>
    %c0_31 = arith.constant 0 : index
    %c256_32 = arith.constant 256 : index
    %53 = vector.load %arg2[%c0_31, %c256_32] : memref<128x512xbf16, #tpu.memory_space<vmem>>, vector<128x128xbf16>
    %54 = arith.extf %53 : vector<128x128xbf16> to vector<128x128xf32>
    %55 = arith.mulf %52, %54 : vector<128x128xf32>
    %56 = arith.truncf %55 : vector<128x128xf32> to vector<128x128xbf16>
    %c0_33 = arith.constant 0 : index
    %c0_34 = arith.constant 0 : index
    %57 = vector.load %arg4[%c0_33, %c0_34] : memref<128x256xbf16, #tpu.memory_space<vmem>>, vector<128x256xbf16>
    %cst_35 = arith.constant dense<0.000000e+00> : vector<128x256xf32>
    %58 = tpu.matmul %56, %57, %cst_35 {dimension_numbers = #tpu.dot_dimension_numbers<[1], [0], [0], [1], [0, 0, 1, 1], [], []>} : vector<128x128xbf16>, vector<128x256xbf16>, vector<128x256xf32> -> vector<128x256xf32>
    %c0_36 = arith.constant 0 : index
    %c640 = arith.constant 640 : index
    %59 = vector.load %arg5[%c0_36, %c640] : memref<1x896xf32, #tpu.memory_space<vmem>>, vector<1x256xf32>
    %60 = vector.broadcast %59 : vector<1x256xf32> to vector<128x256xf32>
    %61 = arith.addf %58, %60 : vector<128x256xf32>
    %c0_37 = arith.constant 0 : index
    %c0_38 = arith.constant 0 : index
    %62 = vector.load %arg6[%c0_37, %c0_38] : memref<128x384xf32, #tpu.memory_space<vmem>>, vector<128x256xf32>
    tpu.vector_store %arg6[%c0_37, %c0_38], %61 {strides = array<i32>} : memref<128x384xf32, #tpu.memory_space<vmem>>, vector<128x256xf32>,
    %c0_39 = arith.constant 0 : index
    %c256_40 = arith.constant 256 : index
    %63 = vector.load %arg6[%c0_39, %c256_40] : memref<128x384xf32, #tpu.memory_space<vmem>>, vector<128x64xf32>
    tpu.vector_store %arg6[%c0_39, %c256_40], %24 {strides = array<i32>} : memref<128x384xf32, #tpu.memory_space<vmem>>, vector<128x64xf32>,
    %c0_41 = arith.constant 0 : index
    %c320 = arith.constant 320 : index
    %64 = vector.load %arg6[%c0_41, %c320] : memref<128x384xf32, #tpu.memory_space<vmem>>, vector<128x32xf32>
    tpu.vector_store %arg6[%c0_41, %c320], %33 {strides = array<i32>} : memref<128x384xf32, #tpu.memory_space<vmem>>, vector<128x32xf32>,
    %cst_42 = arith.constant 0.000000e+00 : f32
    %65 = vector.broadcast %cst_42 : f32 to vector<128x32xf32>
    %c0_43 = arith.constant 0 : index
    %c352 = arith.constant 352 : index
    %66 = vector.load %arg6[%c0_43, %c352] : memref<128x384xf32, #tpu.memory_space<vmem>>, vector<128x32xf32>
    tpu.vector_store %arg6[%c0_43, %c352], %65 {strides = array<i32>} : memref<128x384xf32, #tpu.memory_space<vmem>>, vector<128x32xf32>,
    return
  }
  func.func @transform_0(%arg0: i32) -> (i32, i32) {
    %c0_i32 = arith.constant 0 : i32
    %c0_i32_0 = arith.constant 0 : i32
    return %arg0, %c0_i32 : i32, i32
  }
  func.func @transform_1(%arg0: i32) -> (i32, i32) {
    %c0_i32 = arith.constant 0 : i32
    %c0_i32_0 = arith.constant 0 : i32
    return %arg0, %c0_i32 : i32, i32
  }
  func.func @transform_2(%arg0: i32) -> (i32, i32) {
    %c0_i32 = arith.constant 0 : i32
    %c0_i32_0 = arith.constant 0 : i32
    %c0_i32_1 = arith.constant 0 : i32
    return %c0_i32, %c0_i32_0 : i32, i32
  }
  func.func @transform_3(%arg0: i32) -> (i32, i32) {
    %c0_i32 = arith.constant 0 : i32
    %c0_i32_0 = arith.constant 0 : i32
    %c0_i32_1 = arith.constant 0 : i32
    return %c0_i32, %c0_i32_0 : i32, i32
  }
  func.func @transform_4(%arg0: i32) -> (i32, i32) {
    %c0_i32 = arith.constant 0 : i32
    %c0_i32_0 = arith.constant 0 : i32
    %c0_i32_1 = arith.constant 0 : i32
    return %c0_i32, %c0_i32_0 : i32, i32
  }
  func.func @transform_5(%arg0: i32) -> (i32, i32) {
    %c0_i32 = arith.constant 0 : i32
    %c0_i32_0 = arith.constant 0 : i32
    return %arg0, %c0_i32 : i32, i32
  }
}

</mosaic_0001>

<llo_original>
// kernel: tpu_custom_call.1
$region0: #{tpu_custom_call.1}
  #allocation0 [shape = 'u32[]', space=smem, size = 0x4, offset = 0x4, fixed_abs, tag = 'smem constant byte address 0x4 - core index']
  #allocation1 [shape = 'u32[144,128]{1,0:T(1,128)}', space=vmem, size = 0x12000, scoped, tag = 'internal scratch']
  %s0 = inlined_call_operand.hbm [shape: bf16[256,256], index: 0, kind: input, shape index: {}]
  %s1 = inlined_call_operand.hbm [shape: bf16[256,512], index: 1, kind: input, shape index: {}]
  %s2 = inlined_call_operand.hbm [shape: bf16[672,128], index: 2, kind: input, shape index: {}]
  %s3 = inlined_call_operand.hbm [shape: bf16[128,256], index: 3, kind: input, shape index: {}]
  %s4 = inlined_call_operand.vmem [shape: f32[1,896], index: 4, kind: input, shape index: {}]
  %s5 = inlined_call_operand.hbm [shape: f32[256,384], index: 5, kind: output, shape index: {}]
  %s6 = sld [smem:[#allocation0]]
  $region69: #{tpu_custom_call.1} parent=0
    _
  %s8 = ssub.s32 1, %s6
  %s9 = scalar_select 0, %s8, %s6
  $region1: #{tpu_custom_call.1} parent=0
    #allocation2 [shape = 'u8[131072]{0}', space=vmem, size = 0x20000, scoped, tag = 'input window, operand 0']
    #allocation3 [shape = 's32[2]{0}', space=sflag, size = 0x8, scoped, tag = 'scoped memory for tpu_custom_call.1']
    #allocation4 [shape = 's32[2]{0}', space=sflag, size = 0x8, scoped, tag = 'scoped memory for tpu_custom_call.1']
    #allocation5 [shape = 'u8[262144]{0}', space=vmem, size = 0x40000, scoped, tag = 'input window, operand 1']
    #allocation6 [shape = 's32[2]{0}', space=sflag, size = 0x8, scoped, tag = 'scoped memory for tpu_custom_call.1']
    #allocation7 [shape = 'u8[172032]{0}', space=vmem, size = 0x2a000, scoped, tag = 'input window, operand 2, single buffered']
    #allocation8 [shape = 'u8[65536]{0}', space=vmem, size = 0x10000, scoped, tag = 'input window, operand 3, single buffered']
    #allocation9 [shape = 's32[1]{0}', space=sflag, size = 0x4, scoped, tag = 'scoped memory for tpu_custom_call.1']
    #allocation10 [shape = 'u8[393216]{0}', space=vmem, size = 0x60000, scoped, tag = 'output window, operand 0']
    %10 = vsyncpa [#allocation3], 0
    %s11 = scalar_lea.sflag [#allocation3], 1
    %12 = vsyncpa %s11, 0
    %13 = vsyncpa [#allocation6], 0
    %s14 = scalar_lea.sflag [#allocation6], 1
    %15 = vsyncpa %s14, 0
    %16 = vsyncpa [#allocation9], 0
    %17 = vsyncpa [#allocation4], 0
    %s18 = scalar_lea.sflag [#allocation4], 1
    %19 = vsyncpa %s18, 0
    loop: start=0, step=1, limit=4
    $region2: #{tpu_custom_call.1} parent=1 // loop_pre_header
      _
    $region3: #{tpu_custom_call.1} parent=1 // loop_header
      %s21 = sphi 0, %s25
      %p22 = scmp.ge.s32.totalorder %s21, 4
      %s31 = sphi 0, %s33
      %s34 = sphi 0, %s31
      %s35 = sphi 0, %s34
      %s51 = sphi 0, %s35
      %s57 = sphi 0, %s59
      %s60 = sphi 0, %s57
      %s61 = sphi 0, %s60
      %s77 = sphi 0, %s61
      %s81 = sphi 0, %s81
      %s83 = sphi 0, %s81
      %s84 = sphi 0, %s83
      %s98 = sphi 0, %s84
      %s102 = sphi 0, %s102
      %s104 = sphi 0, %s102
      %s105 = sphi 0, %s104
      %s119 = sphi 0, %s105
      %s123 = sphi 0, %s123
      %s125 = sphi 0, %s123
      %s126 = sphi 0, %s125
      %s140 = sphi 0, %s126
      %s146 = sphi 0, %s148
      %s149 = sphi 0, %s146
      %s150 = sphi 0, %s149
      %s166 = sphi 0, %s150
    $region4: #{tpu_custom_call.1} parent=1 // loop_header_branch
      %24 = sbr.rel (%p22) target = $region8
    $region5: #{tpu_custom_call.1} parent=1 // loop_body
      %s26 = ssub.s32 %s21, 1
      %s27 = ssub.s32 %s21, 2
      %s28 = sadd.s32 %s21, 1
      %s29 = ssub.s32 %s21, %s28
      %p30 = scmp.eq.s32.totalorder %s29, 0
      %s32 = sadd.s32 %s31, 1
      %s33 = scalar_select %p30, %s31, %s32
      %p36 = pneg %p30
      %p37 = scmp.eq.s32.totalorder %s21, 1
      %p38 = por %p36, %p37
      %p39 = scmp.ne.s32.totalorder %s31, %s34
      %p40 = scmp.eq.s32.totalorder %s21, 0
      %p41 = por %p39, %p40
      %p42 = scmp.ne.s32.totalorder %s31, %s34
      %p43 = scmp.eq.s32.totalorder %s26, 1
      %p44 = por %p42, %p43
      %p45 = scmp.ne.s32.totalorder %s34, %s35
      %p46 = scmp.eq.s32.totalorder %s26, 0
      %p47 = por %p45, %p46
      %p48 = scmp.ne.s32.totalorder %s34, %s35
      %p49 = scmp.eq.s32.totalorder %s27, 1
      %p50 = por %p48, %p49
      %p52 = scmp.ne.s32.totalorder %s35, %s51
      %p53 = scmp.eq.s32.totalorder %s27, 0
      %p54 = por %p52, %p53
      %s55 = ssub.s32 %s21, %s28
      %p56 = scmp.eq.s32.totalorder %s55, 0
      %s58 = sadd.s32 %s57, 1
      %s59 = scalar_select %p56, %s57, %s58
      %p62 = pneg %p56
      %p63 = scmp.eq.s32.totalorder %s21, 1
      %p64 = por %p62, %p63
      %p65 = scmp.ne.s32.totalorder %s57, %s60
      %p66 = scmp.eq.s32.totalorder %s21, 0
      %p67 = por %p65, %p66
      %p68 = scmp.ne.s32.totalorder %s57, %s60
      %p69 = scmp.eq.s32.totalorder %s26, 1
      %p70 = por %p68, %p69
      %p71 = scmp.ne.s32.totalorder %s60, %s61
      %p72 = scmp.eq.s32.totalorder %s26, 0
      %p73 = por %p71, %p72
      %p74 = scmp.ne.s32.totalorder %s60, %s61
      %p75 = scmp.eq.s32.totalorder %s27, 1
      %p76 = por %p74, %p75
      %p78 = scmp.ne.s32.totalorder %s61, %s77
      %p79 = scmp.eq.s32.totalorder %s27, 0
      %p80 = por %p78, %p79
      %s82 = sadd.s32 %s81, 1
      %p85 = scmp.eq.s32.totalorder %s21, 1
      %p86 = scmp.ne.s32.totalorder %s81, %s83
      %p87 = scmp.eq.s32.totalorder %s21, 0
      %p88 = por %p86, %p87
      %p89 = scmp.ne.s32.totalorder %s81, %s83
      %p90 = scmp.eq.s32.totalorder %s26, 1
      %p91 = por %p89, %p90
      %p92 = scmp.ne.s32.totalorder %s83, %s84
      %p93 = scmp.eq.s32.totalorder %s26, 0
      %p94 = por %p92, %p93
      %p95 = scmp.ne.s32.totalorder %s83, %s84
      %p96 = scmp.eq.s32.totalorder %s27, 1
      %p97 = por %p95, %p96
      %p99 = scmp.ne.s32.totalorder %s84, %s98
      %p100 = scmp.eq.s32.totalorder %s27, 0
      %p101 = por %p99, %p100
      %s103 = sadd.s32 %s102, 1
      %p106 = scmp.eq.s32.totalorder %s21, 1
      %p107 = scmp.ne.s32.totalorder %s102, %s104
      %p108 = scmp.eq.s32.totalorder %s21, 0
      %p109 = por %p107, %p108
      %p110 = scmp.ne.s32.totalorder %s102, %s104
      %p111 = scmp.eq.s32.totalorder %s26, 1
      %p112 = por %p110, %p111
      %p113 = scmp.ne.s32.totalorder %s104, %s105
      %p114 = scmp.eq.s32.totalorder %s26, 0
      %p115 = por %p113, %p114
      %p116 = scmp.ne.s32.totalorder %s104, %s105
      %p117 = scmp.eq.s32.totalorder %s27, 1
      %p118 = por %p116, %p117
      %p120 = scmp.ne.s32.totalorder %s105, %s119
      %p121 = scmp.eq.s32.totalorder %s27, 0
      %p122 = por %p120, %p121
      %s124 = sadd.s32 %s123, 1
      %p127 = scmp.eq.s32.totalorder %s21, 1
      %p128 = scmp.ne.s32.totalorder %s123, %s125
      %p129 = scmp.eq.s32.totalorder %s21, 0
      %p130 = por %p128, %p129
      %p131 = scmp.ne.s32.totalorder %s123, %s125
      %p132 = scmp.eq.s32.totalorder %s26, 1
      %p133 = por %p131, %p132
      %p134 = scmp.ne.s32.totalorder %s125, %s126
      %p135 = scmp.eq.s32.totalorder %s26, 0
      %p136 = por %p134, %p135
      %p137 = scmp.ne.s32.totalorder %s125, %s126
      %p138 = scmp.eq.s32.totalorder %s27, 1
      %p139 = por %p137, %p138
      %p141 = scmp.ne.s32.totalorder %s126, %s140
      %p142 = scmp.eq.s32.totalorder %s27, 0
      %p143 = por %p141, %p142
      %s144 = ssub.s32 %s21, %s28
      %p145 = scmp.eq.s32.totalorder %s144, 0
      %s147 = sadd.s32 %s146, 1
      %s148 = scalar_select %p145, %s146, %s147
      %p151 = pneg %p145
      %p152 = scmp.eq.s32.totalorder %s21, 1
      %p153 = por %p151, %p152
      %p154 = scmp.ne.s32.totalorder %s146, %s149
      %p155 = scmp.eq.s32.totalorder %s21, 0
      %p156 = por %p154, %p155
      %p157 = scmp.ne.s32.totalorder %s146, %s149
      %p158 = scmp.eq.s32.totalorder %s26, 1
      %p159 = por %p157, %p158
      %p160 = scmp.ne.s32.totalorder %s149, %s150
      %p161 = scmp.eq.s32.totalorder %s26, 0
      %p162 = por %p160, %p161
      %p163 = scmp.ne.s32.totalorder %s149, %s150
      %p164 = scmp.eq.s32.totalorder %s27, 1
      %p165 = por %p163, %p164
      %p167 = scmp.ne.s32.totalorder %s150, %s166
      %p168 = scmp.eq.s32.totalorder %s27, 0
      %p169 = por %p167, %p168
      %p170 = scmp.le.s32.totalorder 1, %s21
      %p171 = scmp.lt.s32.totalorder %s21, 3
      %p172 = pnand %p170, %p171
      %p173 = pneg %p172
      // Predicated region
      $region9: #{tpu_custom_call.1} parent=5 // pred_check
        _
      $region10: #{tpu_custom_call.1} parent=5 // pred_check_branch
        %175 = sbr.rel (%p172) target = $region12
      $region11: #{tpu_custom_call.1} parent=5 // pred_region
        %s176 = ssub.s32 %s21, 1
        // Predicated region
        $region13: #{tpu_custom_call.1} parent=11 // pred_check
          %p177 = pneg %p94
        $region14: #{tpu_custom_call.1} parent=11 // pred_check_branch
          %179 = sbr.rel (%p177) target = $region16
        $region15: #{tpu_custom_call.1} parent=11 // pred_region
          %s181 = ssub.s32 5376, 5376
          %182 = vsyncadd [#allocation6], %s181
          %s183 = sshll.u32 [#allocation7], 4
          %s184 = int_to_ptr.vmem [resolvable:$true] %s183
          %189 = dma.hbm_to_vmem [thread:$0]  %s2, 5376, %s184, [#allocation6], 64, 64, 4
        $region16: #{tpu_custom_call.1} parent=11 // pred_fallthru
          _
        // Predicated region
        $region17: #{tpu_custom_call.1} parent=11 // pred_check
          %p190 = pneg %p115
        $region18: #{tpu_custom_call.1} parent=11 // pred_check_branch
          %192 = sbr.rel (%p190) target = $region20
        $region19: #{tpu_custom_call.1} parent=11 // pred_region
          %s194 = ssub.s32 2048, 2048
          %195 = vsyncadd [#allocation9], %s194
          %s196 = sshll.u32 [#allocation8], 4
          %s197 = int_to_ptr.vmem [resolvable:$true] %s196
          %202 = dma.hbm_to_vmem [thread:$0]  %s3, 2048, %s197, [#allocation9], 128, 128, 8
        $region20: #{tpu_custom_call.1} parent=11 // pred_fallthru
          _
        // Predicated region
        $region21: #{tpu_custom_call.1} parent=11 // pred_check
          %p203 = pneg %p136
        $region22: #{tpu_custom_call.1} parent=11 // pred_check_branch
          %205 = sbr.rel (%p203) target = $region24
        $region23: #{tpu_custom_call.1} parent=11 // pred_region
          _
        $region24: #{tpu_custom_call.1} parent=11 // pred_fallthru
          _
      $region12: #{tpu_custom_call.1} parent=5 // pred_fallthru
        _
      %p206 = scmp.lt.s32.totalorder %s21, 2
      // Predicated region
      $region25: #{tpu_custom_call.1} parent=5 // pred_check
        %p207 = pneg %p206
      $region26: #{tpu_custom_call.1} parent=5 // pred_check_branch
        %209 = sbr.rel (%p207) target = $region28
      $region27: #{tpu_custom_call.1} parent=5 // pred_region
        // Predicated region
        $region29: #{tpu_custom_call.1} parent=27 // pred_check
          %p210 = pneg %p41
        $region30: #{tpu_custom_call.1} parent=27 // pred_check_branch
          %212 = sbr.rel (%p210) target = $region32
        $region31: #{tpu_custom_call.1} parent=27 // pred_region
          %s213 = sand.u32 %s31, 1
          %s214 = scalar_lea.sflag [#allocation3], %s213
          %s215 = sand.u32 %s31, 1
          %s216 = smul.addr %s215, 128
          %s217 = scalar_lea.vmem [#allocation2], %s216
          %s218 = smul.u32 16, %s21
          %s220 = ssub.s32 2048, 2048
          %221 = vsyncadd %s214, %s220
          %s222 = smul.addr %s218, 2
          %s223 = smul.addr %s222, 64
          %s224 = scalar_lea.hbm %s0, %s223
          %s225 = sshll.u32 %s217, 4
          %s226 = int_to_ptr.vmem [resolvable:$true] %s225
          %231 = dma.hbm_to_vmem [thread:$0]  %s224, 2048, %s226, %s214, 128, 128, 8
        $region32: #{tpu_custom_call.1} parent=27 // pred_fallthru
          _
        // Predicated region
        $region33: #{tpu_custom_call.1} parent=27 // pred_check
          %p232 = pneg %p67
        $region34: #{tpu_custom_call.1} parent=27 // pred_check_branch
          %234 = sbr.rel (%p232) target = $region36
        $region35: #{tpu_custom_call.1} parent=27 // pred_region
          %s235 = sand.u32 %s21, 1
          %s236 = scalar_lea.sflag [#allocation6], %s235
          %s237 = sand.u32 %s57, 1
          %s238 = smul.addr %s237, 256
          %s239 = scalar_lea.vmem [#allocation5], %s238
          %s240 = smul.u32 16, %s21
          %s242 = ssub.s32 4096, 4096
          %243 = vsyncadd %s236, %s242
          %s244 = smul.addr %s240, 4
          %s245 = smul.addr %s244, 64
          %s246 = scalar_lea.hbm %s1, %s245
          %s247 = sshll.u32 %s239, 4
          %s248 = int_to_ptr.vmem [resolvable:$true] %s247
          %253 = dma.hbm_to_vmem [thread:$0]  %s246, 4096, %s248, %s236, 256, 256, 16
        $region36: #{tpu_custom_call.1} parent=27 // pred_fallthru
          _
      $region28: #{tpu_custom_call.1} parent=5 // pred_fallthru
        _
      %p254 = scmp.le.s32.totalorder 1, %s21
      %p255 = scmp.lt.s32.totalorder %s21, 3
      %p256 = pnand %p254, %p255
      %p257 = pneg %p256
      // Predicated region
      $region37: #{tpu_custom_call.1} parent=5 // pred_check
        _
      $region38: #{tpu_custom_call.1} parent=5 // pred_check_branch
        %259 = sbr.rel (%p256) target = $region40
      $region39: #{tpu_custom_call.1} parent=5 // pred_region
        %s260 = ssub.s32 %s21, 1
        %s261 = sand.u32 %s34, 1
        %s262 = scalar_lea.sflag [#allocation3], %s261
        %s263 = sand.u32 %s34, 1
        %s264 = smul.addr %s263, 128
        %s265 = scalar_lea.vmem [#allocation2], %s264
        // Predicated region
        $region41: #{tpu_custom_call.1} parent=39 // pred_check
          %p266 = pneg %p47
        $region42: #{tpu_custom_call.1} parent=39 // pred_check_branch
          %268 = sbr.rel (%p266) target = $region44
        $region43: #{tpu_custom_call.1} parent=39 // pred_region
          %269 = dma.done %s262, 2048
        $region44: #{tpu_custom_call.1} parent=39 // pred_fallthru
          _
        %s270 = sand.u32 %s26, 1
        %s271 = scalar_lea.sflag [#allocation6], %s270
        %s272 = sand.u32 %s60, 1
        %s273 = smul.addr %s272, 256
        %s274 = scalar_lea.vmem [#allocation5], %s273
        // Predicated region
        $region45: #{tpu_custom_call.1} parent=39 // pred_check
          %p275 = pneg %p73
        $region46: #{tpu_custom_call.1} parent=39 // pred_check_branch
          %277 = sbr.rel (%p275) target = $region48
        $region47: #{tpu_custom_call.1} parent=39 // pred_region
          %278 = dma.done %s271, 4096
        $region48: #{tpu_custom_call.1} parent=39 // pred_fallthru
          _
        // Predicated region
        $region49: #{tpu_custom_call.1} parent=39 // pred_check
          %p279 = pneg %p94
        $region50: #{tpu_custom_call.1} parent=39 // pred_check_branch
          %281 = sbr.rel (%p279) target = $region52
        $region51: #{tpu_custom_call.1} parent=39 // pred_region
          %282 = dma.done [#allocation6], 5376
        $region52: #{tpu_custom_call.1} parent=39 // pred_fallthru
          _
        // Predicated region
        $region53: #{tpu_custom_call.1} parent=39 // pred_check
          %p283 = pneg %p115
        $region54: #{tpu_custom_call.1} parent=39 // pred_check_branch
          %285 = sbr.rel (%p283) target = $region56
        $region55: #{tpu_custom_call.1} parent=39 // pred_region
          %286 = dma.done [#allocation9], 2048
        $region56: #{tpu_custom_call.1} parent=39 // pred_fallthru
          _
        %s287 = sand.u32 %s34, 1
        %s288 = scalar_lea.sflag [#allocation3], %s287
        %s289 = sand.u32 %s34, 1
        %s290 = smul.addr %s289, 128
        %s291 = scalar_lea.vmem [#allocation2], %s290
        %p292 = pneg %p47
        %p293 = pneg %p44
        %s294 = sand.u32 %s26, 1
        %s295 = scalar_lea.sflag [#allocation6], %s294
        %s296 = sand.u32 %s60, 1
        %s297 = smul.addr %s296, 256
        %s298 = scalar_lea.vmem [#allocation5], %s297
        %p299 = pneg %p73
        %p300 = pneg %p70
        %p301 = pneg %p94
        %p302 = pneg %p91
        %p303 = pneg %p115
        %p304 = pneg %p112
        %p305 = pneg %p136
        %p306 = pneg %p133
        %p307 = pneg %p162
        %p308 = pneg %p159
        %s309 = sand.u32 %s149, 1
        %s310 = scalar_lea.sflag [#allocation4], %s309
        %s311 = sand.u32 %s149, 1
        %s312 = smul.addr %s311, 384
        %s313 = scalar_lea.vmem [#allocation10], %s312
        %s314 = smul.u32 16, %s26
        %s315 = smul.u32 16, %s26
        %s316 = smul.u32 16, %s26
        %v318 = vld [vmem:[%s265] sm:$0xff]
        %v319 = vld [vmem:[%s265 + $0x8] sm:$0xff]
        %v320 = vld [vmem:[%s265 + $0x10] sm:$0xff]
        %v321 = vld [vmem:[%s265 + $0x18] sm:$0xff]
        %v322 = vld [vmem:[%s265 + $0x20] sm:$0xff]
        %v323 = vld [vmem:[%s265 + $0x28] sm:$0xff]
        %v324 = vld [vmem:[%s265 + $0x30] sm:$0xff]
        %v325 = vld [vmem:[%s265 + $0x38] sm:$0xff]
        %v326 = vld [vmem:[%s265 + $0x40] sm:$0xff]
        %v327 = vld [vmem:[%s265 + $0x48] sm:$0xff]
        %v328 = vld [vmem:[%s265 + $0x50] sm:$0xff]
        %v329 = vld [vmem:[%s265 + $0x58] sm:$0xff]
        %v330 = vld [vmem:[%s265 + $0x60] sm:$0xff]
        %v331 = vld [vmem:[%s265 + $0x68] sm:$0xff]
        %v332 = vld [vmem:[%s265 + $0x70] sm:$0xff]
        %v333 = vld [vmem:[%s265 + $0x78] sm:$0xff]
        %v334 = vld [vmem:[#allocation7] sm:$0xf]
        %v335 = vld [vmem:[#allocation7 + $0x4] sm:$0xf]
        %v336 = vld [vmem:[#allocation7 + $0x8] sm:$0xf]
        %v337 = vld [vmem:[#allocation7 + $0xc] sm:$0xf]
        %v338 = vld [vmem:[#allocation7 + $0x10] sm:$0xf]
        %v339 = vld [vmem:[#allocation7 + $0x14] sm:$0xf]
        %v340 = vld [vmem:[#allocation7 + $0x18] sm:$0xf]
        %v341 = vld [vmem:[#allocation7 + $0x1c] sm:$0xf]
        %v342 = vld [vmem:[#allocation7 + $0x20] sm:$0xf]
        %v343 = vld [vmem:[#allocation7 + $0x24] sm:$0xf]
        %v344 = vld [vmem:[#allocation7 + $0x28] sm:$0xf]
        %v345 = vld [vmem:[#allocation7 + $0x2c] sm:$0xf]
        %v346 = vld [vmem:[#allocation7 + $0x30] sm:$0xf]
        %v347 = vld [vmem:[#allocation7 + $0x34] sm:$0xf]
        %v348 = vld [vmem:[#allocation7 + $0x38] sm:$0xf]
        %v349 = vld [vmem:[#allocation7 + $0x3c] sm:$0xf]
        %v350 = vld [vmem:[#allocation7 + $0x40] sm:$0xf]
        %v351 = vld [vmem:[#allocation7 + $0x44] sm:$0xf]
        %v352 = vld [vmem:[#allocation7 + $0x48] sm:$0xf]
        %v353 = vld [vmem:[#allocation7 + $0x4c] sm:$0xf]
        %v354 = vld [vmem:[#allocation7 + $0x50] sm:$0xf]
        %v355 = vld [vmem:[#allocation7 + $0x54] sm:$0xf]
        %v356 = vld [vmem:[#allocation7 + $0x58] sm:$0xf]
        %v357 = vld [vmem:[#allocation7 + $0x5c] sm:$0xf]
        %v358 = vld [vmem:[#allocation7 + $0x60] sm:$0xf]
        %v359 = vld [vmem:[#allocation7 + $0x64] sm:$0xf]
        %v360 = vld [vmem:[#allocation7 + $0x68] sm:$0xf]
        %v361 = vld [vmem:[#allocation7 + $0x6c] sm:$0xf]
        %v362 = vld [vmem:[#allocation7 + $0x70] sm:$0xf]
        %v363 = vld [vmem:[#allocation7 + $0x74] sm:$0xf]
        %v364 = vld [vmem:[#allocation7 + $0x78] sm:$0xf]
        %v365 = vld [vmem:[#allocation7 + $0x7c] sm:$0xf]
        %v366 = vld [vmem:[%s4] sm:$0x1]
        %v368 = vlaneseq
        %v369 = vshrl.u32 %v368, 7
        %v370 = vsub.s32 0, %v369
        %v371 = vrot.slane %v366, %v370
        %v389 = vunpack.c.l.b16 %v318
        %v390 = vunpack.c.h.b16 %v318
        %v391 = vunpack.c.l.b16 %v319
        %v392 = vunpack.c.h.b16 %v319
        %v393 = vunpack.c.l.b16 %v320
        %v394 = vunpack.c.h.b16 %v320
        %v395 = vunpack.c.l.b16 %v321
        %v396 = vunpack.c.h.b16 %v321
        %v397 = vunpack.c.l.b16 %v322
        %v398 = vunpack.c.h.b16 %v322
        %v399 = vunpack.c.l.b16 %v323
        %v400 = vunpack.c.h.b16 %v323
        %v401 = vunpack.c.l.b16 %v324
        %v402 = vunpack.c.h.b16 %v324
        %v403 = vunpack.c.l.b16 %v325
        %v404 = vunpack.c.h.b16 %v325
        %v405 = vunpack.c.l.b16 %v326
        %v406 = vunpack.c.h.b16 %v326
        %v407 = vunpack.c.l.b16 %v327
        %v408 = vunpack.c.h.b16 %v327
        %v409 = vunpack.c.l.b16 %v328
        %v410 = vunpack.c.h.b16 %v328
        %v411 = vunpack.c.l.b16 %v329
        %v412 = vunpack.c.h.b16 %v329
        %v413 = vunpack.c.l.b16 %v330
        %v414 = vunpack.c.h.b16 %v330
        %v415 = vunpack.c.l.b16 %v331
        %v416 = vunpack.c.h.b16 %v331
        %v417 = vunpack.c.l.b16 %v332
        %v418 = vunpack.c.h.b16 %v332
        %v419 = vunpack.c.l.b16 %v333
        %v420 = vunpack.c.h.b16 %v333
        %v421 = vpack.c.b16 %v391, %v389
        %v422 = vpack.c.b16 %v392, %v390
        %v423 = vpack.c.b16 %v395, %v393
        %v424 = vpack.c.b16 %v396, %v394
        %v425 = vpack.c.b16 %v399, %v397
        %v426 = vpack.c.b16 %v400, %v398
        %v427 = vpack.c.b16 %v403, %v401
        %v428 = vpack.c.b16 %v404, %v402
        %v429 = vpack.c.b16 %v407, %v405
        %v430 = vpack.c.b16 %v408, %v406
        %v431 = vpack.c.b16 %v411, %v409
        %v432 = vpack.c.b16 %v412, %v410
        %v433 = vpack.c.b16 %v415, %v413
        %v434 = vpack.c.b16 %v416, %v414
        %v435 = vpack.c.b16 %v419, %v417
        %v436 = vpack.c.b16 %v420, %v418
        %v485 = vunpack.c.l.b16 %v334
        %v486 = vunpack.c.l.b16 %v335
        %v487 = vunpack.c.l.b16 %v336
        %v488 = vunpack.c.l.b16 %v337
        %v489 = vunpack.c.l.b16 %v338
        %v490 = vunpack.c.l.b16 %v339
        %v491 = vunpack.c.l.b16 %v340
        %v492 = vunpack.c.l.b16 %v341
        %v493 = vunpack.c.l.b16 %v342
        %v494 = vunpack.c.l.b16 %v343
        %v495 = vunpack.c.l.b16 %v344
        %v496 = vunpack.c.l.b16 %v345
        %v497 = vunpack.c.l.b16 %v346
        %v498 = vunpack.c.l.b16 %v347
        %v499 = vunpack.c.l.b16 %v348
        %v500 = vunpack.c.l.b16 %v349
        %v501 = vunpack.c.l.b16 %v350
        %v502 = vunpack.c.l.b16 %v351
        %v503 = vunpack.c.l.b16 %v352
        %v504 = vunpack.c.l.b16 %v353
        %v505 = vunpack.c.l.b16 %v354
        %v506 = vunpack.c.l.b16 %v355
        %v507 = vunpack.c.l.b16 %v356
        %v508 = vunpack.c.l.b16 %v357
        %v509 = vunpack.c.l.b16 %v358
        %v510 = vunpack.c.l.b16 %v359
        %v511 = vunpack.c.l.b16 %v360
        %v512 = vunpack.c.l.b16 %v361
        %v513 = vunpack.c.l.b16 %v362
        %v514 = vunpack.c.l.b16 %v363
        %v515 = vunpack.c.l.b16 %v364
        %v516 = vunpack.c.l.b16 %v365
        %v517 = vpack.c.b16 %v486, %v485
        %v518 = vpack.c.b16 %v488, %v487
        %v519 = vpack.c.b16 %v490, %v489
        %v520 = vpack.c.b16 %v492, %v491
        %v521 = vpack.c.b16 %v494, %v493
        %v522 = vpack.c.b16 %v496, %v495
        %v523 = vpack.c.b16 %v498, %v497
        %v524 = vpack.c.b16 %v500, %v499
        %v525 = vpack.c.b16 %v502, %v501
        %v526 = vpack.c.b16 %v504, %v503
        %v527 = vpack.c.b16 %v506, %v505
        %v528 = vpack.c.b16 %v508, %v507
        %v529 = vpack.c.b16 %v510, %v509
        %v530 = vpack.c.b16 %v512, %v511
        %v531 = vpack.c.b16 %v514, %v513
        %v532 = vpack.c.b16 %v516, %v515
        %549 = vmatprep.subr.bf16.mxu0 0
        %550 = vmatpush1.bf16.msra.mxu0 %v517
        %551 = vmatprep.subr.bf16.mxu0 0
        %552 = vmatpush1.bf16.msra.mxu0 %v518
        %553 = vmatprep.subr.bf16.mxu0 0
        %554 = vmatpush1.bf16.msra.mxu0 %v519
        %555 = vmatprep.subr.bf16.mxu0 0
        %556 = vmatpush1.bf16.msra.mxu0 %v520
        %557 = vmatprep.subr.bf16.mxu0 0
        %558 = vmatpush1.bf16.msra.mxu0 %v521
        %559 = vmatprep.subr.bf16.mxu0 0
        %560 = vmatpush1.bf16.msra.mxu0 %v522
        %561 = vmatprep.subr.bf16.mxu0 0
        %562 = vmatpush1.bf16.msra.mxu0 %v523
        %563 = vmatprep.subr.bf16.mxu0 0
        %564 = vmatpush1.bf16.msra.mxu0 %v524
        %565 = vmatprep.subr.bf16.mxu0 0
        %566 = vmatpush1.bf16.msra.mxu0 %v525
        %567 = vmatprep.subr.bf16.mxu0 0
        %568 = vmatpush1.bf16.msra.mxu0 %v526
        %569 = vmatprep.subr.bf16.mxu0 0
        %570 = vmatpush1.bf16.msra.mxu0 %v527
        %571 = vmatprep.subr.bf16.mxu0 0
        %572 = vmatpush1.bf16.msra.mxu0 %v528
        %573 = vmatprep.subr.bf16.mxu0 0
        %574 = vmatpush1.bf16.msra.mxu0 %v529
        %575 = vmatprep.subr.bf16.mxu0 0
        %576 = vmatpush1.bf16.msra.mxu0 %v530
        %577 = vmatprep.subr.bf16.mxu0 0
        %578 = vmatpush1.bf16.msra.mxu0 %v531
        %579 = vmatprep.subr.bf16.mxu0 0
        %580 = vmatpush1.bf16.msra.mxu0 %v532
        %581 = vmatprep.mubr.bf16.mxu0 %v422
        %582 = vmatmul.mubr.bf16.gmra.mrb[0].mxu0 %v421
        %v583 = vpop.f32.mrb[0].mxu0
        %v584 = vadd.f32 %v371, %v583
        %v585 = vpop.f32.mrb[0].mxu0
        %v586 = vpop.f32.mrb[0].mxu0
        %v587 = vadd.f32 %v371, %v586
        %v588 = vpop.f32.mrb[0].mxu0
        %589 = vmatprep.mubr.bf16.mxu0 %v424
        %590 = vmatmul.mubr.bf16.gmra.mrb[0].mxu0 %v423
        %v591 = vpop.f32.mrb[0].mxu0
        %v592 = vadd.f32 %v371, %v591
        %v593 = vpop.f32.mrb[0].mxu0
        %v594 = vpop.f32.mrb[0].mxu0
        %v595 = vadd.f32 %v371, %v594
        %v596 = vpop.f32.mrb[0].mxu0
        %597 = vmatprep.mubr.bf16.mxu0 %v426
        %598 = vmatmul.mubr.bf16.gmra.mrb[0].mxu0 %v425
        %v599 = vpop.f32.mrb[0].mxu0
        %v600 = vadd.f32 %v371, %v599
        %v601 = vpop.f32.mrb[0].mxu0
        %v602 = vpop.f32.mrb[0].mxu0
        %v603 = vadd.f32 %v371, %v602
        %v604 = vpop.f32.mrb[0].mxu0
        %605 = vmatprep.mubr.bf16.mxu0 %v428
        %606 = vmatmul.mubr.bf16.gmra.mrb[0].mxu0 %v427
        %v607 = vpop.f32.mrb[0].mxu0
        %v608 = vadd.f32 %v371, %v607
        %v609 = vpop.f32.mrb[0].mxu0
        %v610 = vpop.f32.mrb[0].mxu0
        %v611 = vadd.f32 %v371, %v610
        %v612 = vpop.f32.mrb[0].mxu0
        %613 = vmatprep.mubr.bf16.mxu0 %v430
        %614 = vmatmul.mubr.bf16.gmra.mrb[0].mxu0 %v429
        %v615 = vpop.f32.mrb[0].mxu0
        %v616 = vadd.f32 %v371, %v615
        %v617 = vpop.f32.mrb[0].mxu0
        %v618 = vpop.f32.mrb[0].mxu0
        %v619 = vadd.f32 %v371, %v618
        %v620 = vpop.f32.mrb[0].mxu0
        %621 = vmatprep.mubr.bf16.mxu0 %v432
        %622 = vmatmul.mubr.bf16.gmra.mrb[0].mxu0 %v431
        %v623 = vpop.f32.mrb[0].mxu0
        %v624 = vadd.f32 %v371, %v623
        %v625 = vpop.f32.mrb[0].mxu0
        %v626 = vpop.f32.mrb[0].mxu0
        %v627 = vadd.f32 %v371, %v626
        %v628 = vpop.f32.mrb[0].mxu0
        %629 = vmatprep.mubr.bf16.mxu0 %v434
        %630 = vmatmul.mubr.bf16.gmra.mrb[0].mxu0 %v433
        %v631 = vpop.f32.mrb[0].mxu0
        %v632 = vadd.f32 %v371, %v631
        %v633 = vpop.f32.mrb[0].mxu0
        %v634 = vpop.f32.mrb[0].mxu0
        %v635 = vadd.f32 %v371, %v634
        %v636 = vpop.f32.mrb[0].mxu0
        %637 = vmatprep.mubr.bf16.mxu0 %v436
        %638 = vmatmul.mubr.bf16.gmra.mrb[0].mxu0 %v435
        %v639 = vpop.f32.mrb[0].mxu0
        %v640 = vadd.f32 %v371, %v639
        %v641 = vpop.f32.mrb[0].mxu0
        %v642 = vpop.f32.mrb[0].mxu0
        %v643 = vadd.f32 %v371, %v642
        %v644 = vpop.f32.mrb[0].mxu0
        %645 = vdwg.mxu0
        %v646 = vmax.f32 %v584, 0.0
        %v647 = vmax.f32 %v587, 0.0
        %v648 = vmax.f32 %v592, 0.0
        %v649 = vmax.f32 %v595, 0.0
        %v650 = vmax.f32 %v600, 0.0
        %v651 = vmax.f32 %v603, 0.0
        %v652 = vmax.f32 %v608, 0.0
        %v653 = vmax.f32 %v611, 0.0
        %v654 = vmax.f32 %v616, 0.0
        %v655 = vmax.f32 %v619, 0.0
        %v656 = vmax.f32 %v624, 0.0
        %v657 = vmax.f32 %v627, 0.0
        %v658 = vmax.f32 %v632, 0.0
        %v659 = vmax.f32 %v635, 0.0
        %v660 = vmax.f32 %v640, 0.0
        %v661 = vmax.f32 %v643, 0.0
        %v662 = vld [vmem:[%s274] sm:$0xf]
        %v663 = vld [vmem:[%s274 + $0x10] sm:$0xf]
        %v664 = vld [vmem:[%s274 + $0x20] sm:$0xf]
        %v665 = vld [vmem:[%s274 + $0x30] sm:$0xf]
        %v666 = vld [vmem:[%s274 + $0x40] sm:$0xf]
        %v667 = vld [vmem:[%s274 + $0x50] sm:$0xf]
        %v668 = vld [vmem:[%s274 + $0x60] sm:$0xf]
        %v669 = vld [vmem:[%s274 + $0x70] sm:$0xf]
        %v670 = vld [vmem:[%s274 + $0x80] sm:$0xf]
        %v671 = vld [vmem:[%s274 + $0x90] sm:$0xf]
        %v672 = vld [vmem:[%s274 + $0xa0] sm:$0xf]
        %v673 = vld [vmem:[%s274 + $0xb0] sm:$0xf]
        %v674 = vld [vmem:[%s274 + $0xc0] sm:$0xf]
        %v675 = vld [vmem:[%s274 + $0xd0] sm:$0xf]
        %v676 = vld [vmem:[%s274 + $0xe0] sm:$0xf]
        %v677 = vld [vmem:[%s274 + $0xf0] sm:$0xf]
        %v678 = vunpack.c.l.bf16 %v662
        %v679 = vunpack.c.l.bf16 %v663
        %v680 = vunpack.c.l.bf16 %v664
        %v681 = vunpack.c.l.bf16 %v665
        %v682 = vunpack.c.l.bf16 %v666
        %v683 = vunpack.c.l.bf16 %v667
        %v684 = vunpack.c.l.bf16 %v668
        %v685 = vunpack.c.l.bf16 %v669
        %v686 = vunpack.c.l.bf16 %v670
        %v687 = vunpack.c.l.bf16 %v671
        %v688 = vunpack.c.l.bf16 %v672
        %v689 = vunpack.c.l.bf16 %v673
        %v690 = vunpack.c.l.bf16 %v674
        %v691 = vunpack.c.l.bf16 %v675
        %v692 = vunpack.c.l.bf16 %v676
        %v693 = vunpack.c.l.bf16 %v677
        %v694 = vmul.f32 %v646, %v678
        %v695 = vmul.f32 %v647, %v679
        %v696 = vmul.f32 %v648, %v680
        %v697 = vmul.f32 %v649, %v681
        %v698 = vmul.f32 %v650, %v682
        %v699 = vmul.f32 %v651, %v683
        %v700 = vmul.f32 %v652, %v684
        %v701 = vmul.f32 %v653, %v685
        %v702 = vmul.f32 %v654, %v686
        %v703 = vmul.f32 %v655, %v687
        %v704 = vmul.f32 %v656, %v688
        %v705 = vmul.f32 %v657, %v689
        %v706 = vmul.f32 %v658, %v690
        %v707 = vmul.f32 %v659, %v691
        %v708 = vmul.f32 %v660, %v692
        %v709 = vmul.f32 %v661, %v693
        %v710 = vpack.c.bf16 %v695, %v694
        %v711 = vpack.c.bf16 %v697, %v696
        %v712 = vpack.c.bf16 %v699, %v698
        %v713 = vpack.c.bf16 %v701, %v700
        %v714 = vpack.c.bf16 %v703, %v702
        %v715 = vpack.c.bf16 %v705, %v704
        %v716 = vpack.c.bf16 %v707, %v706
        %v717 = vpack.c.bf16 %v709, %v708
        %v718 = vld [vmem:[#allocation7 + $0x80] sm:$0xf]
        %v719 = vld [vmem:[#allocation7 + $0x84] sm:$0xf]
        %v720 = vld [vmem:[#allocation7 + $0x88] sm:$0xf]
        %v721 = vld [vmem:[#allocation7 + $0x8c] sm:$0xf]
        %v722 = vld [vmem:[#allocation7 + $0x90] sm:$0xf]
        %v723 = vld [vmem:[#allocation7 + $0x94] sm:$0xf]
        %v724 = vld [vmem:[#allocation7 + $0x98] sm:$0xf]
        %v725 = vld [vmem:[#allocation7 + $0x9c] sm:$0xf]
        %v726 = vld [vmem:[#allocation7 + $0xa0] sm:$0xf]
        %v727 = vld [vmem:[#allocation7 + $0xa4] sm:$0xf]
        %v728 = vld [vmem:[#allocation7 + $0xa8] sm:$0xf]
        %v729 = vld [vmem:[#allocation7 + $0xac] sm:$0xf]
        %v730 = vld [vmem:[#allocation7 + $0xb0] sm:$0xf]
        %v731 = vld [vmem:[#allocation7 + $0xb4] sm:$0xf]
        %v732 = vld [vmem:[#allocation7 + $0xb8] sm:$0xf]
        %v733 = vld [vmem:[#allocation7 + $0xbc] sm:$0xf]
        %v734 = vld [vmem:[%s4 + $0x1] sm:$0x1]
        %v736 = vlaneseq
        %v737 = vshrl.u32 %v736, 7
        %v738 = vsub.s32 0, %v737
        %v739 = vrot.slane %v734, %v738
        %v757 = vunpack.c.l.b16 %v718
        %v758 = vunpack.c.l.b16 %v719
        %v759 = vunpack.c.l.b16 %v720
        %v760 = vunpack.c.l.b16 %v721
        %v761 = vunpack.c.l.b16 %v722
        %v762 = vunpack.c.l.b16 %v723
        %v763 = vunpack.c.l.b16 %v724
        %v764 = vunpack.c.l.b16 %v725
        %v765 = vunpack.c.l.b16 %v726
        %v766 = vunpack.c.l.b16 %v727
        %v767 = vunpack.c.l.b16 %v728
        %v768 = vunpack.c.l.b16 %v729
        %v769 = vunpack.c.l.b16 %v730
        %v770 = vunpack.c.l.b16 %v731
        %v771 = vunpack.c.l.b16 %v732
        %v772 = vunpack.c.l.b16 %v733
        %v773 = vpack.c.b16 %v758, %v757
        %v774 = vpack.c.b16 %v760, %v759
        %v775 = vpack.c.b16 %v762, %v761
        %v776 = vpack.c.b16 %v764, %v763
        %v777 = vpack.c.b16 %v766, %v765
        %v778 = vpack.c.b16 %v768, %v767
        %v779 = vpack.c.b16 %v770, %v769
        %v780 = vpack.c.b16 %v772, %v771
        %789 = vmatprep.subr.bf16.mxu0 0
        %790 = vmatpush1.bf16.msra.mxu0 %v773
        %791 = vmatprep.subr.bf16.mxu0 0
        %792 = vmatpush1.bf16.msra.mxu0 %v774
        %793 = vmatprep.subr.bf16.mxu0 0
        %794 = vmatpush1.bf16.msra.mxu0 %v775
        %795 = vmatprep.subr.bf16.mxu0 0
        %796 = vmatpush1.bf16.msra.mxu0 %v776
        %797 = vmatprep.subr.bf16.mxu0 0
        %798 = vmatpush1.bf16.msra.mxu0 %v777
        %799 = vmatprep.subr.bf16.mxu0 0
        %800 = vmatpush1.bf16.msra.mxu0 %v778
        %801 = vmatprep.subr.bf16.mxu0 0
        %802 = vmatpush1.bf16.msra.mxu0 %v779
        %803 = vmatprep.subr.bf16.mxu0 0
        %804 = vmatpush1.bf16.msra.mxu0 %v780
        %805 = vmatprep.subr.bf16.mxu0 0
        %806 = vmatpush1.bf16.msra.mxu0 0
        %807 = vmatprep.subr.bf16.mxu0 0
        %808 = vmatpush1.bf16.msra.mxu0 0
        %809 = vmatprep.subr.bf16.mxu0 0
        %810 = vmatpush1.bf16.msra.mxu0 0
        %811 = vmatprep.subr.bf16.mxu0 0
        %812 = vmatpush1.bf16.msra.mxu0 0
        %813 = vmatprep.subr.bf16.mxu0 0
        %814 = vmatpush1.bf16.msra.mxu0 0
        %815 = vmatprep.subr.bf16.mxu0 0
        %816 = vmatpush1.bf16.msra.mxu0 0
        %817 = vmatprep.subr.bf16.mxu0 0
        %818 = vmatpush1.bf16.msra.mxu0 0
        %819 = vmatprep.subr.bf16.mxu0 0
        %820 = vmatpush1.bf16.msra.mxu0 0
        %821 = vmatprep.mubr.bf16.mxu0 0
        %822 = vmatmul.mubr.bf16.gmra.mrb[0].mxu0 %v710
        %v823 = vpop.f32.mrb[0].mxu0
        %v824 = vadd.f32 %v739, %v823
        %v825 = vpop.f32.mrb[0].mxu0
        %v826 = vpop.f32.mrb[0].mxu0
        %v827 = vadd.f32 %v739, %v826
        %v828 = vpop.f32.mrb[0].mxu0
        %829 = vmatprep.mubr.bf16.mxu0 0
        %830 = vmatmul.mubr.bf16.gmra.mrb[0].mxu0 %v711
        %v831 = vpop.f32.mrb[0].mxu0
        %v832 = vadd.f32 %v739, %v831
        %v833 = vpop.f32.mrb[0].mxu0
        %v834 = vpop.f32.mrb[0].mxu0
        %v835 = vadd.f32 %v739, %v834
        %v836 = vpop.f32.mrb[0].mxu0
        %837 = vmatprep.mubr.bf16.mxu0 0
        %838 = vmatmul.mubr.bf16.gmra.mrb[0].mxu0 %v712
        %v839 = vpop.f32.mrb[0].mxu0
        %v840 = vadd.f32 %v739, %v839
        %v841 = vpop.f32.mrb[0].mxu0
        %v842 = vpop.f32.mrb[0].mxu0
        %v843 = vadd.f32 %v739, %v842
        %v844 = vpop.f32.mrb[0].mxu0
        %845 = vmatprep.mubr.bf16.mxu0 0
        %846 = vmatmul.mubr.bf16.gmra.mrb[0].mxu0 %v713
        %v847 = vpop.f32.mrb[0].mxu0
        %v848 = vadd.f32 %v739, %v847
        %v849 = vpop.f32.mrb[0].mxu0
        %v850 = vpop.f32.mrb[0].mxu0
        %v851 = vadd.f32 %v739, %v850
        %v852 = vpop.f32.mrb[0].mxu0
        %853 = vmatprep.mubr.bf16.mxu0 0
        %854 = vmatmul.mubr.bf16.gmra.mrb[0].mxu0 %v714
        %v855 = vpop.f32.mrb[0].mxu0
        %v856 = vadd.f32 %v739, %v855
        %v857 = vpop.f32.mrb[0].mxu0
        %v858 = vpop.f32.mrb[0].mxu0
        %v859 = vadd.f32 %v739, %v858
        %v860 = vpop.f32.mrb[0].mxu0
        %861 = vmatprep.mubr.bf16.mxu0 0
        %862 = vmatmul.mubr.bf16.gmra.mrb[0].mxu0 %v715
        %v863 = vpop.f32.mrb[0].mxu0
        %v864 = vadd.f32 %v739, %v863
        %v865 = vpop.f32.mrb[0].mxu0
        %v866 = vpop.f32.mrb[0].mxu0
        %v867 = vadd.f32 %v739, %v866
        %v868 = vpop.f32.mrb[0].mxu0
        %869 = vmatprep.mubr.bf16.mxu0 0
        %870 = vmatmul.mubr.bf16.gmra.mrb[0].mxu0 %v716
        %v871 = vpop.f32.mrb[0].mxu0
        %v872 = vadd.f32 %v739, %v871
        %v873 = vpop.f32.mrb[0].mxu0
        %v874 = vpop.f32.mrb[0].mxu0
        %v875 = vadd.f32 %v739, %v874
        %v876 = vpop.f32.mrb[0].mxu0
        %877 = vmatprep.mubr.bf16.mxu0 0
        %878 = vmatmul.mubr.bf16.gmra.mrb[0].mxu0 %v717
        %v879 = vpop.f32.mrb[0].mxu0
        %v880 = vadd.f32 %v739, %v879
        %v881 = vpop.f32.mrb[0].mxu0
        %v882 = vpop.f32.mrb[0].mxu0
        %v883 = vadd.f32 %v739, %v882
        %v884 = vpop.f32.mrb[0].mxu0
        %885 = vdwg.mxu0
        %v886 = vmax.f32 %v824, 0.0
        %v887 = vmax.f32 %v827, 0.0
        %v888 = vmax.f32 %v832, 0.0
        %v889 = vmax.f32 %v835, 0.0
        %v890 = vmax.f32 %v840, 0.0
        %v891 = vmax.f32 %v843, 0.0
        %v892 = vmax.f32 %v848, 0.0
        %v893 = vmax.f32 %v851, 0.0
        %v894 = vmax.f32 %v856, 0.0
        %v895 = vmax.f32 %v859, 0.0
        %v896 = vmax.f32 %v864, 0.0
        %v897 = vmax.f32 %v867, 0.0
        %v898 = vmax.f32 %v872, 0.0
        %v899 = vmax.f32 %v875, 0.0
        %v900 = vmax.f32 %v880, 0.0
        %v901 = vmax.f32 %v883, 0.0
        %v902 = vpack.c.bf16 %v887, %v886
        %v903 = vpack.c.bf16 %v889, %v888
        %v904 = vpack.c.bf16 %v891, %v890
        %v905 = vpack.c.bf16 %v893, %v892
        %v906 = vpack.c.bf16 %v895, %v894
        %v907 = vpack.c.bf16 %v897, %v896
        %v908 = vpack.c.bf16 %v899, %v898
        %v909 = vpack.c.bf16 %v901, %v900
        %v910 = vld [vmem:[#allocation7 + $0xc0] sm:$0xf]
        %v911 = vld [vmem:[#allocation7 + $0xc4] sm:$0xf]
        %v912 = vld [vmem:[#allocation7 + $0xc8] sm:$0xf]
        %v913 = vld [vmem:[#allocation7 + $0xcc] sm:$0xf]
        %v914 = vld [vmem:[#allocation7 + $0xd0] sm:$0xf]
        %v915 = vld [vmem:[#allocation7 + $0xd4] sm:$0xf]
        %v916 = vld [vmem:[#allocation7 + $0xd8] sm:$0xf]
        %v917 = vld [vmem:[#allocation7 + $0xdc] sm:$0xf]
        %v918 = vld [vmem:[#allocation7 + $0xe0] sm:$0xf]
        %v919 = vld [vmem:[#allocation7 + $0xe4] sm:$0xf]
        %v920 = vld [vmem:[#allocation7 + $0xe8] sm:$0xf]
        %v921 = vld [vmem:[#allocation7 + $0xec] sm:$0xf]
        %v922 = vld [vmem:[#allocation7 + $0xf0] sm:$0xf]
        %v923 = vld [vmem:[#allocation7 + $0xf4] sm:$0xf]
        %v924 = vld [vmem:[#allocation7 + $0xf8] sm:$0xf]
        %v925 = vld [vmem:[#allocation7 + $0xfc] sm:$0xf]
        %v926 = vld [vmem:[%s4 + $0x2] sm:$0x1]
        %v928 = vlaneseq
        %v929 = vshrl.u32 %v928, 7
        %v930 = vsub.s32 0, %v929
        %v931 = vrot.slane %v926, %v930
        %v949 = vunpack.c.l.b16 %v910
        %v950 = vunpack.c.l.b16 %v911
        %v951 = vunpack.c.l.b16 %v912
        %v952 = vunpack.c.l.b16 %v913
        %v953 = vunpack.c.l.b16 %v914
        %v954 = vunpack.c.l.b16 %v915
        %v955 = vunpack.c.l.b16 %v916
        %v956 = vunpack.c.l.b16 %v917
        %v957 = vunpack.c.l.b16 %v918
        %v958 = vunpack.c.l.b16 %v919
        %v959 = vunpack.c.l.b16 %v920
        %v960 = vunpack.c.l.b16 %v921
        %v961 = vunpack.c.l.b16 %v922
        %v962 = vunpack.c.l.b16 %v923
        %v963 = vunpack.c.l.b16 %v924
        %v964 = vunpack.c.l.b16 %v925
        %v965 = vpack.c.b16 %v950, %v949
        %v966 = vpack.c.b16 %v952, %v951
        %v967 = vpack.c.b16 %v954, %v953
        %v968 = vpack.c.b16 %v956, %v955
        %v969 = vpack.c.b16 %v958, %v957
        %v970 = vpack.c.b16 %v960, %v959
        %v971 = vpack.c.b16 %v962, %v961
        %v972 = vpack.c.b16 %v964, %v963
        %981 = vmatprep.subr.bf16.mxu0 0
        %982 = vmatpush1.bf16.msra.mxu0 %v965
        %983 = vmatprep.subr.bf16.mxu0 0
        %984 = vmatpush1.bf16.msra.mxu0 %v966
        %985 = vmatprep.subr.bf16.mxu0 0
        %986 = vmatpush1.bf16.msra.mxu0 %v967
        %987 = vmatprep.subr.bf16.mxu0 0
        %988 = vmatpush1.bf16.msra.mxu0 %v968
        %989 = vmatprep.subr.bf16.mxu0 0
        %990 = vmatpush1.bf16.msra.mxu0 %v969
        %991 = vmatprep.subr.bf16.mxu0 0
        %992 = vmatpush1.bf16.msra.mxu0 %v970
        %993 = vmatprep.subr.bf16.mxu0 0
        %994 = vmatpush1.bf16.msra.mxu0 %v971
        %995 = vmatprep.subr.bf16.mxu0 0
        %996 = vmatpush1.bf16.msra.mxu0 %v972
        %997 = vmatprep.subr.bf16.mxu0 0
        %998 = vmatpush1.bf16.msra.mxu0 0
        %999 = vmatprep.subr.bf16.mxu0 0
        %1000 = vmatpush1.bf16.msra.mxu0 0
        %1001 = vmatprep.subr.bf16.mxu0 0
        %1002 = vmatpush1.bf16.msra.mxu0 0
        %1003 = vmatprep.subr.bf16.mxu0 0
        %1004 = vmatpush1.bf16.msra.mxu0 0
        %1005 = vmatprep.subr.bf16.mxu0 0
        %1006 = vmatpush1.bf16.msra.mxu0 0
        %1007 = vmatprep.subr.bf16.mxu0 0
        %1008 = vmatpush1.bf16.msra.mxu0 0
        %1009 = vmatprep.subr.bf16.mxu0 0
        %1010 = vmatpush1.bf16.msra.mxu0 0
        %1011 = vmatprep.subr.bf16.mxu0 0
        %1012 = vmatpush1.bf16.msra.mxu0 0
        %1013 = vmatprep.mubr.bf16.mxu0 0
        %1014 = vmatmul.mubr.bf16.gmra.mrb[0].mxu0 %v902
        %v1015 = vpop.f32.mrb[0].mxu0
        %v1016 = vadd.f32 %v931, %v1015
        %v1017 = vpop.f32.mrb[0].mxu0
        %v1018 = vpop.f32.mrb[0].mxu0
        %v1019 = vadd.f32 %v931, %v1018
        %v1020 = vpop.f32.mrb[0].mxu0
        %1021 = vmatprep.mubr.bf16.mxu0 0
        %1022 = vmatmul.mubr.bf16.gmra.mrb[0].mxu0 %v903
        %v1023 = vpop.f32.mrb[0].mxu0
        %v1024 = vadd.f32 %v931, %v1023
        %v1025 = vpop.f32.mrb[0].mxu0
        %v1026 = vpop.f32.mrb[0].mxu0
        %v1027 = vadd.f32 %v931, %v1026
        %v1028 = vpop.f32.mrb[0].mxu0
        %1029 = vmatprep.mubr.bf16.mxu0 0
        %1030 = vmatmul.mubr.bf16.gmra.mrb[0].mxu0 %v904
        %v1031 = vpop.f32.mrb[0].mxu0
        %v1032 = vadd.f32 %v931, %v1031
        %v1033 = vpop.f32.mrb[0].mxu0
        %v1034 = vpop.f32.mrb[0].mxu0
        %v1035 = vadd.f32 %v931, %v1034
        %v1036 = vpop.f32.mrb[0].mxu0
        %1037 = vmatprep.mubr.bf16.mxu0 0
        %1038 = vmatmul.mubr.bf16.gmra.mrb[0].mxu0 %v905
        %v1039 = vpop.f32.mrb[0].mxu0
        %v1040 = vadd.f32 %v931, %v1039
        %v1041 = vpop.f32.mrb[0].mxu0
        %v1042 = vpop.f32.mrb[0].mxu0
        %v1043 = vadd.f32 %v931, %v1042
        %v1044 = vpop.f32.mrb[0].mxu0
        %1045 = vmatprep.mubr.bf16.mxu0 0
        %1046 = vmatmul.mubr.bf16.gmra.mrb[0].mxu0 %v906
        %v1047 = vpop.f32.mrb[0].mxu0
        %v1048 = vadd.f32 %v931, %v1047
        %v1049 = vpop.f32.mrb[0].mxu0
        %v1050 = vpop.f32.mrb[0].mxu0
        %v1051 = vadd.f32 %v931, %v1050
        %v1052 = vpop.f32.mrb[0].mxu0
        %1053 = vmatprep.mubr.bf16.mxu0 0
        %1054 = vmatmul.mubr.bf16.gmra.mrb[0].mxu0 %v907
        %v1055 = vpop.f32.mrb[0].mxu0
        %v1056 = vadd.f32 %v931, %v1055
        %v1057 = vpop.f32.mrb[0].mxu0
        %v1058 = vpop.f32.mrb[0].mxu0
        %v1059 = vadd.f32 %v931, %v1058
        %v1060 = vpop.f32.mrb[0].mxu0
        %1061 = vmatprep.mubr.bf16.mxu0 0
        %1062 = vmatmul.mubr.bf16.gmra.mrb[0].mxu0 %v908
        %v1063 = vpop.f32.mrb[0].mxu0
        %v1064 = vadd.f32 %v931, %v1063
        %v1065 = vpop.f32.mrb[0].mxu0
        %v1066 = vpop.f32.mrb[0].mxu0
        %v1067 = vadd.f32 %v931, %v1066
        %v1068 = vpop.f32.mrb[0].mxu0
        %1069 = vmatprep.mubr.bf16.mxu0 0
        %1070 = vmatmul.mubr.bf16.gmra.mrb[0].mxu0 %v909
        %v1071 = vpop.f32.mrb[0].mxu0
        %v1072 = vadd.f32 %v931, %v1071
        %v1073 = vpop.f32.mrb[0].mxu0
        %v1074 = vpop.f32.mrb[0].mxu0
        %v1075 = vadd.f32 %v931, %v1074
        %v1076 = vpop.f32.mrb[0].mxu0
        %1077 = vdwg.mxu0
        %v1078 = vmul.f32 %v1016, 0.5
        %v1079 = vmul.f32 %v1019, 0.5
        %v1080 = vmul.f32 %v1024, 0.5
        %v1081 = vmul.f32 %v1027, 0.5
        %v1082 = vmul.f32 %v1032, 0.5
        %v1083 = vmul.f32 %v1035, 0.5
        %v1084 = vmul.f32 %v1040, 0.5
        %v1085 = vmul.f32 %v1043, 0.5
        %v1086 = vmul.f32 %v1048, 0.5
        %v1087 = vmul.f32 %v1051, 0.5
        %v1088 = vmul.f32 %v1056, 0.5
        %v1089 = vmul.f32 %v1059, 0.5
        %v1090 = vmul.f32 %v1064, 0.5
        %v1091 = vmul.f32 %v1067, 0.5
        %v1092 = vmul.f32 %v1072, 0.5
        %v1093 = vmul.f32 %v1075, 0.5
        %v1094 = vmul.f32 %v1078, 1.442695
        %v1095 = vpow.pop %v1094
        %v1096 = vmul.f32 %v1079, 1.442695
        %v1097 = vpow.pop %v1096
        %v1098 = vmul.f32 %v1080, 1.442695
        %v1099 = vpow.pop %v1098
        %v1100 = vmul.f32 %v1081, 1.442695
        %v1101 = vpow.pop %v1100
        %v1102 = vmul.f32 %v1082, 1.442695
        %v1103 = vpow.pop %v1102
        %v1104 = vmul.f32 %v1083, 1.442695
        %v1105 = vpow.pop %v1104
        %v1106 = vmul.f32 %v1084, 1.442695
        %v1107 = vpow.pop %v1106
        %v1108 = vmul.f32 %v1085, 1.442695
        %v1109 = vpow.pop %v1108
        %v1110 = vmul.f32 %v1086, 1.442695
        %v1111 = vpow.pop %v1110
        %v1112 = vmul.f32 %v1087, 1.442695
        %v1113 = vpow.pop %v1112
        %v1114 = vmul.f32 %v1088, 1.442695
        %v1115 = vpow.pop %v1114
        %v1116 = vmul.f32 %v1089, 1.442695
        %v1117 = vpow.pop %v1116
        %v1118 = vmul.f32 %v1090, 1.442695
        %v1119 = vpow.pop %v1118
        %v1120 = vmul.f32 %v1091, 1.442695
        %v1121 = vpow.pop %v1120
        %v1122 = vmul.f32 %v1092, 1.442695
        %v1123 = vpow.pop %v1122
        %v1124 = vmul.f32 %v1093, 1.442695
        %v1125 = vpow.pop %v1124
        %v1126 = vld [vmem:[%s274 + $0xc] sm:$0xf]
        %v1127 = vld [vmem:[%s274 + $0x1c] sm:$0xf]
        %v1128 = vld [vmem:[%s274 + $0x2c] sm:$0xf]
        %v1129 = vld [vmem:[%s274 + $0x3c] sm:$0xf]
        %v1130 = vld [vmem:[%s274 + $0x4c] sm:$0xf]
        %v1131 = vld [vmem:[%s274 + $0x5c] sm:$0xf]
        %v1132 = vld [vmem:[%s274 + $0x6c] sm:$0xf]
        %v1133 = vld [vmem:[%s274 + $0x7c] sm:$0xf]
        %v1134 = vld [vmem:[%s274 + $0x8c] sm:$0xf]
        %v1135 = vld [vmem:[%s274 + $0x9c] sm:$0xf]
        %v1136 = vld [vmem:[%s274 + $0xac] sm:$0xf]
        %v1137 = vld [vmem:[%s274 + $0xbc] sm:$0xf]
        %v1138 = vld [vmem:[%s274 + $0xcc] sm:$0xf]
        %v1139 = vld [vmem:[%s274 + $0xdc] sm:$0xf]
        %v1140 = vld [vmem:[%s274 + $0xec] sm:$0xf]
        %v1141 = vld [vmem:[%s274 + $0xfc] sm:$0xf]
        %v1142 = vunpack.c.l.bf16 %v1126
        %v1143 = vunpack.c.l.bf16 %v1127
        %v1144 = vunpack.c.l.bf16 %v1128
        %v1145 = vunpack.c.l.bf16 %v1129
        %v1146 = vunpack.c.l.bf16 %v1130
        %v1147 = vunpack.c.l.bf16 %v1131
        %v1148 = vunpack.c.l.bf16 %v1132
        %v1149 = vunpack.c.l.bf16 %v1133
        %v1150 = vunpack.c.l.bf16 %v1134
        %v1151 = vunpack.c.l.bf16 %v1135
        %v1152 = vunpack.c.l.bf16 %v1136
        %v1153 = vunpack.c.l.bf16 %v1137
        %v1154 = vunpack.c.l.bf16 %v1138
        %v1155 = vunpack.c.l.bf16 %v1139
        %v1156 = vunpack.c.l.bf16 %v1140
        %v1157 = vunpack.c.l.bf16 %v1141
        %1174 = vrot.lane.b32.xlu0 %v1095, 96
        %v1175 = vpop.permute.xlu0 %1174
        %1176 = vrot.lane.b32.xlu0 %v1097, 96
        %v1177 = vpop.permute.xlu0 %1176
        %1178 = vrot.lane.b32.xlu0 %v1099, 96
        %v1179 = vpop.permute.xlu0 %1178
        %1180 = vrot.lane.b32.xlu0 %v1101, 96
        %v1181 = vpop.permute.xlu0 %1180
        %1182 = vrot.lane.b32.xlu0 %v1103, 96
        %v1183 = vpop.permute.xlu0 %1182
        %1184 = vrot.lane.b32.xlu0 %v1105, 96
        %v1185 = vpop.permute.xlu0 %1184
        %1186 = vrot.lane.b32.xlu0 %v1107, 96
        %v1187 = vpop.permute.xlu0 %1186
        %1188 = vrot.lane.b32.xlu0 %v1109, 96
        %v1189 = vpop.permute.xlu0 %1188
        %1190 = vrot.lane.b32.xlu0 %v1111, 96
        %v1191 = vpop.permute.xlu0 %1190
        %1192 = vrot.lane.b32.xlu0 %v1113, 96
        %v1193 = vpop.permute.xlu0 %1192
        %1194 = vrot.lane.b32.xlu0 %v1115, 96
        %v1195 = vpop.permute.xlu0 %1194
        %1196 = vrot.lane.b32.xlu0 %v1117, 96
        %v1197 = vpop.permute.xlu0 %1196
        %1198 = vrot.lane.b32.xlu0 %v1119, 96
        %v1199 = vpop.permute.xlu0 %1198
        %1200 = vrot.lane.b32.xlu0 %v1121, 96
        %v1201 = vpop.permute.xlu0 %1200
        %1202 = vrot.lane.b32.xlu0 %v1123, 96
        %v1203 = vpop.permute.xlu0 %1202
        %1204 = vrot.lane.b32.xlu0 %v1125, 96
        %v1205 = vpop.permute.xlu0 %1204
        %v1222 = vmul.f32 %v1142, %v1175
        %v1223 = vmul.f32 %v1143, %v1177
        %v1224 = vmul.f32 %v1144, %v1179
        %v1225 = vmul.f32 %v1145, %v1181
        %v1226 = vmul.f32 %v1146, %v1183
        %v1227 = vmul.f32 %v1147, %v1185
        %v1228 = vmul.f32 %v1148, %v1187
        %v1229 = vmul.f32 %v1149, %v1189
        %v1230 = vmul.f32 %v1150, %v1191
        %v1231 = vmul.f32 %v1151, %v1193
        %v1232 = vmul.f32 %v1152, %v1195
        %v1233 = vmul.f32 %v1153, %v1197
        %v1234 = vmul.f32 %v1154, %v1199
        %v1235 = vmul.f32 %v1155, %v1201
        %v1236 = vmul.f32 %v1156, %v1203
        %v1237 = vmul.f32 %v1157, %v1205
        %v1238 = vadd.f32 %v1222, %v1016
        %v1239 = vadd.f32 %v1223, %v1019
        %v1240 = vadd.f32 %v1224, %v1024
        %v1241 = vadd.f32 %v1225, %v1027
        %v1242 = vadd.f32 %v1226, %v1032
        %v1243 = vadd.f32 %v1227, %v1035
        %v1244 = vadd.f32 %v1228, %v1040
        %v1245 = vadd.f32 %v1229, %v1043
        %v1246 = vadd.f32 %v1230, %v1048
        %v1247 = vadd.f32 %v1231, %v1051
        %v1248 = vadd.f32 %v1232, %v1056
        %v1249 = vadd.f32 %v1233, %v1059
        %v1250 = vadd.f32 %v1234, %v1064
        %v1251 = vadd.f32 %v1235, %v1067
        %v1252 = vadd.f32 %v1236, %v1072
        %v1253 = vadd.f32 %v1237, %v1075
        %v1254 = vpack.c.bf16 %v1239, %v1238
        %v1255 = vpack.c.bf16 %v1241, %v1240
        %v1256 = vpack.c.bf16 %v1243, %v1242
        %v1257 = vpack.c.bf16 %v1245, %v1244
        %v1258 = vpack.c.bf16 %v1247, %v1246
        %v1259 = vpack.c.bf16 %v1249, %v1248
        %v1260 = vpack.c.bf16 %v1251, %v1250
        %v1261 = vpack.c.bf16 %v1253, %v1252
        %v1262 = vld [vmem:[#allocation7 + $0x100] sm:$0xf]
        %v1263 = vld [vmem:[#allocation7 + $0x104] sm:$0xf]
        %v1264 = vld [vmem:[#allocation7 + $0x108] sm:$0xf]
        %v1265 = vld [vmem:[#allocation7 + $0x10c] sm:$0xf]
        %v1266 = vld [vmem:[%s4 + $0x3] sm:$0x1]
        %v1268 = vlaneseq
        %v1269 = vshrl.u32 %v1268, 7
        %v1270 = vsub.s32 0, %v1269
        %v1271 = vrot.slane %v1266, %v1270
        %v1277 = vunpack.c.l.b16 %v1262
        %v1278 = vunpack.c.l.b16 %v1263
        %v1279 = vunpack.c.l.b16 %v1264
        %v1280 = vunpack.c.l.b16 %v1265
        %v1281 = vpack.c.b16 %v1278, %v1277
        %v1282 = vpack.c.b16 %v1280, %v1279
        %vm1285 = vcmask 261120
        %v1287 = vsel %vm1285, %v1254, 0
        %v1290 = vsel %vm1285, %v1255, 0
        %v1293 = vsel %vm1285, %v1256, 0
        %v1296 = vsel %vm1285, %v1257, 0
        %v1299 = vsel %vm1285, %v1258, 0
        %v1302 = vsel %vm1285, %v1259, 0
        %v1305 = vsel %vm1285, %v1260, 0
        %v1308 = vsel %vm1285, %v1261, 0
        %1310 = vmatprep.subr.bf16.mxu0 0
        %1311 = vmatpush1.bf16.msra.mxu0 %v1281
        %1312 = vmatprep.subr.bf16.mxu0 0
        %1313 = vmatpush1.bf16.msra.mxu0 %v1282
        %1314 = vmatprep.subr.bf16.mxu0 0
        %1315 = vmatpush1.bf16.msra.mxu0 0
        %1316 = vmatprep.subr.bf16.mxu0 0
        %1317 = vmatpush1.bf16.msra.mxu0 0
        %1318 = vmatprep.subr.bf16.mxu0 0
        %1319 = vmatpush1.bf16.msra.mxu0 0
        %1320 = vmatprep.subr.bf16.mxu0 0
        %1321 = vmatpush1.bf16.msra.mxu0 0
        %1322 = vmatprep.subr.bf16.mxu0 0
        %1323 = vmatpush1.bf16.msra.mxu0 0
        %1324 = vmatprep.subr.bf16.mxu0 0
        %1325 = vmatpush1.bf16.msra.mxu0 0
        %1326 = vmatprep.subr.bf16.mxu0 0
        %1327 = vmatpush1.bf16.msra.mxu0 0
        %1328 = vmatprep.subr.bf16.mxu0 0
        %1329 = vmatpush1.bf16.msra.mxu0 0
        %1330 = vmatprep.subr.bf16.mxu0 0
        %1331 = vmatpush1.bf16.msra.mxu0 0
        %1332 = vmatprep.subr.bf16.mxu0 0
        %1333 = vmatpush1.bf16.msra.mxu0 0
        %1334 = vmatprep.subr.bf16.mxu0 0
        %1335 = vmatpush1.bf16.msra.mxu0 0
        %1336 = vmatprep.subr.bf16.mxu0 0
        %1337 = vmatpush1.bf16.msra.mxu0 0
        %1338 = vmatprep.subr.bf16.mxu0 0
        %1339 = vmatpush1.bf16.msra.mxu0 0
        %1340 = vmatprep.subr.bf16.mxu0 0
        %1341 = vmatpush1.bf16.msra.mxu0 0
        %1342 = vmatprep.mubr.bf16.mxu0 0
        %1343 = vmatmul.mubr.bf16.gmra.mrb[0].mxu0 %v1287
        %v1344 = vpop.f32.mrb[0].mxu0
        %v1345 = vadd.f32 %v1271, %v1344
        %v1346 = vpop.f32.mrb[0].mxu0
        %v1347 = vpop.f32.mrb[0].mxu0
        %v1348 = vadd.f32 %v1271, %v1347
        %v1349 = vpop.f32.mrb[0].mxu0
        %1350 = vmatprep.mubr.bf16.mxu0 0
        %1351 = vmatmul.mubr.bf16.gmra.mrb[0].mxu0 %v1290
        %v1352 = vpop.f32.mrb[0].mxu0
        %v1353 = vadd.f32 %v1271, %v1352
        %v1354 = vpop.f32.mrb[0].mxu0
        %v1355 = vpop.f32.mrb[0].mxu0
        %v1356 = vadd.f32 %v1271, %v1355
        %v1357 = vpop.f32.mrb[0].mxu0
        %1358 = vmatprep.mubr.bf16.mxu0 0
        %1359 = vmatmul.mubr.bf16.gmra.mrb[0].mxu0 %v1293
        %v1360 = vpop.f32.mrb[0].mxu0
        %v1361 = vadd.f32 %v1271, %v1360
        %v1362 = vpop.f32.mrb[0].mxu0
        %v1363 = vpop.f32.mrb[0].mxu0
        %v1364 = vadd.f32 %v1271, %v1363
        %v1365 = vpop.f32.mrb[0].mxu0
        %1366 = vmatprep.mubr.bf16.mxu0 0
        %1367 = vmatmul.mubr.bf16.gmra.mrb[0].mxu0 %v1296
        %v1368 = vpop.f32.mrb[0].mxu0
        %v1369 = vadd.f32 %v1271, %v1368
        %v1370 = vpop.f32.mrb[0].mxu0
        %v1371 = vpop.f32.mrb[0].mxu0
        %v1372 = vadd.f32 %v1271, %v1371
        %v1373 = vpop.f32.mrb[0].mxu0
        %1374 = vmatprep.mubr.bf16.mxu0 0
        %1375 = vmatmul.mubr.bf16.gmra.mrb[0].mxu0 %v1299
        %v1376 = vpop.f32.mrb[0].mxu0
        %v1377 = vadd.f32 %v1271, %v1376
        %v1378 = vpop.f32.mrb[0].mxu0
        %v1379 = vpop.f32.mrb[0].mxu0
        %v1380 = vadd.f32 %v1271, %v1379
        %v1381 = vpop.f32.mrb[0].mxu0
        %1382 = vmatprep.mubr.bf16.mxu0 0
        %1383 = vmatmul.mubr.bf16.gmra.mrb[0].mxu0 %v1302
        %v1384 = vpop.f32.mrb[0].mxu0
        %v1385 = vadd.f32 %v1271, %v1384
        %v1386 = vpop.f32.mrb[0].mxu0
        %v1387 = vpop.f32.mrb[0].mxu0
        %v1388 = vadd.f32 %v1271, %v1387
        %v1389 = vpop.f32.mrb[0].mxu0
        %1390 = vmatprep.mubr.bf16.mxu0 0
        %1391 = vmatmul.mubr.bf16.gmra.mrb[0].mxu0 %v1305
        %v1392 = vpop.f32.mrb[0].mxu0
        %v1393 = vadd.f32 %v1271, %v1392
        %v1394 = vpop.f32.mrb[0].mxu0
        %v1395 = vpop.f32.mrb[0].mxu0
        %v1396 = vadd.f32 %v1271, %v1395
        %v1397 = vpop.f32.mrb[0].mxu0
        %1398 = vmatprep.mubr.bf16.mxu0 0
        %1399 = vmatmul.mubr.bf16.gmra.mrb[0].mxu0 %v1308
        %v1400 = vpop.f32.mrb[0].mxu0
        %v1401 = vadd.f32 %v1271, %v1400
        %v1402 = vpop.f32.mrb[0].mxu0
        %v1403 = vpop.f32.mrb[0].mxu0
        %v1404 = vadd.f32 %v1271, %v1403
        %v1405 = vpop.f32.mrb[0].mxu0
        %1406 = vdwg.mxu0
        %v1407 = vmax.f32 %v1345, 0.0
        %v1408 = vmax.f32 %v1348, 0.0
        %v1409 = vmax.f32 %v1353, 0.0
        %v1410 = vmax.f32 %v1356, 0.0
        %v1411 = vmax.f32 %v1361, 0.0
        %v1412 = vmax.f32 %v1364, 0.0
        %v1413 = vmax.f32 %v1369, 0.0
        %v1414 = vmax.f32 %v1372, 0.0
        %v1415 = vmax.f32 %v1377, 0.0
        %v1416 = vmax.f32 %v1380, 0.0
        %v1417 = vmax.f32 %v1385, 0.0
        %v1418 = vmax.f32 %v1388, 0.0
        %v1419 = vmax.f32 %v1393, 0.0
        %v1420 = vmax.f32 %v1396, 0.0
        %v1421 = vmax.f32 %v1401, 0.0
        %v1422 = vmax.f32 %v1404, 0.0
        %v1423 = vld [vmem:[%s274 + $0x4] sm:$0xf]
        %v1424 = vld [vmem:[%s274 + $0x14] sm:$0xf]
        %v1425 = vld [vmem:[%s274 + $0x24] sm:$0xf]
        %v1426 = vld [vmem:[%s274 + $0x34] sm:$0xf]
        %v1427 = vld [vmem:[%s274 + $0x44] sm:$0xf]
        %v1428 = vld [vmem:[%s274 + $0x54] sm:$0xf]
        %v1429 = vld [vmem:[%s274 + $0x64] sm:$0xf]
        %v1430 = vld [vmem:[%s274 + $0x74] sm:$0xf]
        %v1431 = vld [vmem:[%s274 + $0x84] sm:$0xf]
        %v1432 = vld [vmem:[%s274 + $0x94] sm:$0xf]
        %v1433 = vld [vmem:[%s274 + $0xa4] sm:$0xf]
        %v1434 = vld [vmem:[%s274 + $0xb4] sm:$0xf]
        %v1435 = vld [vmem:[%s274 + $0xc4] sm:$0xf]
        %v1436 = vld [vmem:[%s274 + $0xd4] sm:$0xf]
        %v1437 = vld [vmem:[%s274 + $0xe4] sm:$0xf]
        %v1438 = vld [vmem:[%s274 + $0xf4] sm:$0xf]
        %v1439 = vunpack.c.l.bf16 %v1423
        %v1440 = vunpack.c.l.bf16 %v1424
        %v1441 = vunpack.c.l.bf16 %v1425
        %v1442 = vunpack.c.l.bf16 %v1426
        %v1443 = vunpack.c.l.bf16 %v1427
        %v1444 = vunpack.c.l.bf16 %v1428
        %v1445 = vunpack.c.l.bf16 %v1429
        %v1446 = vunpack.c.l.bf16 %v1430
        %v1447 = vunpack.c.l.bf16 %v1431
        %v1448 = vunpack.c.l.bf16 %v1432
        %v1449 = vunpack.c.l.bf16 %v1433
        %v1450 = vunpack.c.l.bf16 %v1434
        %v1451 = vunpack.c.l.bf16 %v1435
        %v1452 = vunpack.c.l.bf16 %v1436
        %v1453 = vunpack.c.l.bf16 %v1437
        %v1454 = vunpack.c.l.bf16 %v1438
        %v1455 = vmul.f32 %v1407, %v1439
        %v1456 = vmul.f32 %v1408, %v1440
        %v1457 = vmul.f32 %v1409, %v1441
        %v1458 = vmul.f32 %v1410, %v1442
        %v1459 = vmul.f32 %v1411, %v1443
        %v1460 = vmul.f32 %v1412, %v1444
        %v1461 = vmul.f32 %v1413, %v1445
        %v1462 = vmul.f32 %v1414, %v1446
        %v1463 = vmul.f32 %v1415, %v1447
        %v1464 = vmul.f32 %v1416, %v1448
        %v1465 = vmul.f32 %v1417, %v1449
        %v1466 = vmul.f32 %v1418, %v1450
        %v1467 = vmul.f32 %v1419, %v1451
        %v1468 = vmul.f32 %v1420, %v1452
        %v1469 = vmul.f32 %v1421, %v1453
        %v1470 = vmul.f32 %v1422, %v1454
        %v1471 = vpack.c.bf16 %v1456, %v1455
        %v1472 = vpack.c.bf16 %v1458, %v1457
        %v1473 = vpack.c.bf16 %v1460, %v1459
        %v1474 = vpack.c.bf16 %v1462, %v1461
        %v1475 = vpack.c.bf16 %v1464, %v1463
        %v1476 = vpack.c.bf16 %v1466, %v1465
        %v1477 = vpack.c.bf16 %v1468, %v1467
        %v1478 = vpack.c.bf16 %v1470, %v1469
        %v1479 = vld [vmem:[#allocation7 + $0x110] sm:$0xf]
        %v1480 = vld [vmem:[#allocation7 + $0x114] sm:$0xf]
        %v1481 = vld [vmem:[#allocation7 + $0x118] sm:$0xf]
        %v1482 = vld [vmem:[#allocation7 + $0x11c] sm:$0xf]
        %v1483 = vld [vmem:[#allocation7 + $0x120] sm:$0xf]
        %v1484 = vld [vmem:[#allocation7 + $0x124] sm:$0xf]
        %v1485 = vld [vmem:[#allocation7 + $0x128] sm:$0xf]
        %v1486 = vld [vmem:[#allocation7 + $0x12c] sm:$0xf]
        %v1487 = vld [vmem:[#allocation7 + $0x130] sm:$0xf]
        %v1488 = vld [vmem:[#allocation7 + $0x134] sm:$0xf]
        %v1489 = vld [vmem:[#allocation7 + $0x138] sm:$0xf]
        %v1490 = vld [vmem:[#allocation7 + $0x13c] sm:$0xf]
        %v1491 = vld [vmem:[#allocation7 + $0x140] sm:$0xf]
        %v1492 = vld [vmem:[#allocation7 + $0x144] sm:$0xf]
        %v1493 = vld [vmem:[#allocation7 + $0x148] sm:$0xf]
        %v1494 = vld [vmem:[#allocation7 + $0x14c] sm:$0xf]
        %v1495 = vld [vmem:[%s4 + $0x4] sm:$0x1]
        %v1497 = vlaneseq
        %v1498 = vshrl.u32 %v1497, 7
        %v1499 = vsub.s32 0, %v1498
        %v1500 = vrot.slane %v1495, %v1499
        %v1518 = vunpack.c.l.b16 %v1479
        %v1519 = vunpack.c.l.b16 %v1480
        %v1520 = vunpack.c.l.b16 %v1481
        %v1521 = vunpack.c.l.b16 %v1482
        %v1522 = vunpack.c.l.b16 %v1483
        %v1523 = vunpack.c.l.b16 %v1484
        %v1524 = vunpack.c.l.b16 %v1485
        %v1525 = vunpack.c.l.b16 %v1486
        %v1526 = vunpack.c.l.b16 %v1487
        %v1527 = vunpack.c.l.b16 %v1488
        %v1528 = vunpack.c.l.b16 %v1489
        %v1529 = vunpack.c.l.b16 %v1490
        %v1530 = vunpack.c.l.b16 %v1491
        %v1531 = vunpack.c.l.b16 %v1492
        %v1532 = vunpack.c.l.b16 %v1493
        %v1533 = vunpack.c.l.b16 %v1494
        %v1534 = vpack.c.b16 %v1519, %v1518
        %v1535 = vpack.c.b16 %v1521, %v1520
        %v1536 = vpack.c.b16 %v1523, %v1522
        %v1537 = vpack.c.b16 %v1525, %v1524
        %v1538 = vpack.c.b16 %v1527, %v1526
        %v1539 = vpack.c.b16 %v1529, %v1528
        %v1540 = vpack.c.b16 %v1531, %v1530
        %v1541 = vpack.c.b16 %v1533, %v1532
        %1550 = vmatprep.subr.bf16.mxu0 0
        %1551 = vmatpush1.bf16.msra.mxu0 %v1534
        %1552 = vmatprep.subr.bf16.mxu0 0
        %1553 = vmatpush1.bf16.msra.mxu0 %v1535
        %1554 = vmatprep.subr.bf16.mxu0 0
        %1555 = vmatpush1.bf16.msra.mxu0 %v1536
        %1556 = vmatprep.subr.bf16.mxu0 0
        %1557 = vmatpush1.bf16.msra.mxu0 %v1537
        %1558 = vmatprep.subr.bf16.mxu0 0
        %1559 = vmatpush1.bf16.msra.mxu0 %v1538
        %1560 = vmatprep.subr.bf16.mxu0 0
        %1561 = vmatpush1.bf16.msra.mxu0 %v1539
        %1562 = vmatprep.subr.bf16.mxu0 0
        %1563 = vmatpush1.bf16.msra.mxu0 %v1540
        %1564 = vmatprep.subr.bf16.mxu0 0
        %1565 = vmatpush1.bf16.msra.mxu0 %v1541
        %1566 = vmatprep.subr.bf16.mxu0 0
        %1567 = vmatpush1.bf16.msra.mxu0 0
        %1568 = vmatprep.subr.bf16.mxu0 0
        %1569 = vmatpush1.bf16.msra.mxu0 0
        %1570 = vmatprep.subr.bf16.mxu0 0
        %1571 = vmatpush1.bf16.msra.mxu0 0
        %1572 = vmatprep.subr.bf16.mxu0 0
        %1573 = vmatpush1.bf16.msra.mxu0 0
        %1574 = vmatprep.subr.bf16.mxu0 0
        %1575 = vmatpush1.bf16.msra.mxu0 0
        %1576 = vmatprep.subr.bf16.mxu0 0
        %1577 = vmatpush1.bf16.msra.mxu0 0
        %1578 = vmatprep.subr.bf16.mxu0 0
        %1579 = vmatpush1.bf16.msra.mxu0 0
        %1580 = vmatprep.subr.bf16.mxu0 0
        %1581 = vmatpush1.bf16.msra.mxu0 0
        %1582 = vmatprep.mubr.bf16.mxu0 0
        %1583 = vmatmul.mubr.bf16.gmra.mrb[0].mxu0 %v1471
        %v1584 = vpop.f32.mrb[0].mxu0
        %v1585 = vadd.f32 %v1500, %v1584
        %v1586 = vpop.f32.mrb[0].mxu0
        %v1587 = vpop.f32.mrb[0].mxu0
        %v1588 = vadd.f32 %v1500, %v1587
        %v1589 = vpop.f32.mrb[0].mxu0
        %1590 = vmatprep.mubr.bf16.mxu0 0
        %1591 = vmatmul.mubr.bf16.gmra.mrb[0].mxu0 %v1472
        %v1592 = vpop.f32.mrb[0].mxu0
        %v1593 = vadd.f32 %v1500, %v1592
        %v1594 = vpop.f32.mrb[0].mxu0
        %v1595 = vpop.f32.mrb[0].mxu0
        %v1596 = vadd.f32 %v1500, %v1595
        %v1597 = vpop.f32.mrb[0].mxu0
        %1598 = vmatprep.mubr.bf16.mxu0 0
        %1599 = vmatmul.mubr.bf16.gmra.mrb[0].mxu0 %v1473
        %v1600 = vpop.f32.mrb[0].mxu0
        %v1601 = vadd.f32 %v1500, %v1600
        %v1602 = vpop.f32.mrb[0].mxu0
        %v1603 = vpop.f32.mrb[0].mxu0
        %v1604 = vadd.f32 %v1500, %v1603
        %v1605 = vpop.f32.mrb[0].mxu0
        %1606 = vmatprep.mubr.bf16.mxu0 0
        %1607 = vmatmul.mubr.bf16.gmra.mrb[0].mxu0 %v1474
        %v1608 = vpop.f32.mrb[0].mxu0
        %v1609 = vadd.f32 %v1500, %v1608
        %v1610 = vpop.f32.mrb[0].mxu0
        %v1611 = vpop.f32.mrb[0].mxu0
        %v1612 = vadd.f32 %v1500, %v1611
        %v1613 = vpop.f32.mrb[0].mxu0
        %1614 = vmatprep.mubr.bf16.mxu0 0
        %1615 = vmatmul.mubr.bf16.gmra.mrb[0].mxu0 %v1475
        %v1616 = vpop.f32.mrb[0].mxu0
        %v1617 = vadd.f32 %v1500, %v1616
        %v1618 = vpop.f32.mrb[0].mxu0
        %v1619 = vpop.f32.mrb[0].mxu0
        %v1620 = vadd.f32 %v1500, %v1619
        %v1621 = vpop.f32.mrb[0].mxu0
        %1622 = vmatprep.mubr.bf16.mxu0 0
        %1623 = vmatmul.mubr.bf16.gmra.mrb[0].mxu0 %v1476
        %v1624 = vpop.f32.mrb[0].mxu0
        %v1625 = vadd.f32 %v1500, %v1624
        %v1626 = vpop.f32.mrb[0].mxu0
        %v1627 = vpop.f32.mrb[0].mxu0
        %v1628 = vadd.f32 %v1500, %v1627
        %v1629 = vpop.f32.mrb[0].mxu0
        %1630 = vmatprep.mubr.bf16.mxu0 0
        %1631 = vmatmul.mubr.bf16.gmra.mrb[0].mxu0 %v1477
        %v1632 = vpop.f32.mrb[0].mxu0
        %v1633 = vadd.f32 %v1500, %v1632
        %v1634 = vpop.f32.mrb[0].mxu0
        %v1635 = vpop.f32.mrb[0].mxu0
        %v1636 = vadd.f32 %v1500, %v1635
        %v1637 = vpop.f32.mrb[0].mxu0
        %1638 = vmatprep.mubr.bf16.mxu0 0
        %1639 = vmatmul.mubr.bf16.gmra.mrb[0].mxu0 %v1478
        %v1640 = vpop.f32.mrb[0].mxu0
        %v1641 = vadd.f32 %v1500, %v1640
        %v1642 = vpop.f32.mrb[0].mxu0
        %v1643 = vpop.f32.mrb[0].mxu0
        %v1644 = vadd.f32 %v1500, %v1643
        %v1645 = vpop.f32.mrb[0].mxu0
        %1646 = vdwg.mxu0
        %v1647 = vmax.f32 %v1585, 0.0
        %v1648 = vmax.f32 %v1588, 0.0
        %v1649 = vmax.f32 %v1593, 0.0
        %v1650 = vmax.f32 %v1596, 0.0
        %v1651 = vmax.f32 %v1601, 0.0
        %v1652 = vmax.f32 %v1604, 0.0
        %v1653 = vmax.f32 %v1609, 0.0
        %v1654 = vmax.f32 %v1612, 0.0
        %v1655 = vmax.f32 %v1617, 0.0
        %v1656 = vmax.f32 %v1620, 0.0
        %v1657 = vmax.f32 %v1625, 0.0
        %v1658 = vmax.f32 %v1628, 0.0
        %v1659 = vmax.f32 %v1633, 0.0
        %v1660 = vmax.f32 %v1636, 0.0
        %v1661 = vmax.f32 %v1641, 0.0
        %v1662 = vmax.f32 %v1644, 0.0
        %v1663 = vld [vmem:[%s274 + $0x8] sm:$0xf]
        %v1664 = vld [vmem:[%s274 + $0x18] sm:$0xf]
        %v1665 = vld [vmem:[%s274 + $0x28] sm:$0xf]
        %v1666 = vld [vmem:[%s274 + $0x38] sm:$0xf]
        %v1667 = vld [vmem:[%s274 + $0x48] sm:$0xf]
        %v1668 = vld [vmem:[%s274 + $0x58] sm:$0xf]
        %v1669 = vld [vmem:[%s274 + $0x68] sm:$0xf]
        %v1670 = vld [vmem:[%s274 + $0x78] sm:$0xf]
        %v1671 = vld [vmem:[%s274 + $0x88] sm:$0xf]
        %v1672 = vld [vmem:[%s274 + $0x98] sm:$0xf]
        %v1673 = vld [vmem:[%s274 + $0xa8] sm:$0xf]
        %v1674 = vld [vmem:[%s274 + $0xb8] sm:$0xf]
        %v1675 = vld [vmem:[%s274 + $0xc8] sm:$0xf]
        %v1676 = vld [vmem:[%s274 + $0xd8] sm:$0xf]
        %v1677 = vld [vmem:[%s274 + $0xe8] sm:$0xf]
        %v1678 = vld [vmem:[%s274 + $0xf8] sm:$0xf]
        %v1679 = vunpack.c.l.bf16 %v1663
        %v1680 = vunpack.c.l.bf16 %v1664
        %v1681 = vunpack.c.l.bf16 %v1665
        %v1682 = vunpack.c.l.bf16 %v1666
        %v1683 = vunpack.c.l.bf16 %v1667
        %v1684 = vunpack.c.l.bf16 %v1668
        %v1685 = vunpack.c.l.bf16 %v1669
        %v1686 = vunpack.c.l.bf16 %v1670
        %v1687 = vunpack.c.l.bf16 %v1671
        %v1688 = vunpack.c.l.bf16 %v1672
        %v1689 = vunpack.c.l.bf16 %v1673
        %v1690 = vunpack.c.l.bf16 %v1674
        %v1691 = vunpack.c.l.bf16 %v1675
        %v1692 = vunpack.c.l.bf16 %v1676
        %v1693 = vunpack.c.l.bf16 %v1677
        %v1694 = vunpack.c.l.bf16 %v1678
        %v1695 = vmul.f32 %v1647, %v1679
        %v1696 = vmul.f32 %v1648, %v1680
        %v1697 = vmul.f32 %v1649, %v1681
        %v1698 = vmul.f32 %v1650, %v1682
        %v1699 = vmul.f32 %v1651, %v1683
        %v1700 = vmul.f32 %v1652, %v1684
        %v1701 = vmul.f32 %v1653, %v1685
        %v1702 = vmul.f32 %v1654, %v1686
        %v1703 = vmul.f32 %v1655, %v1687
        %v1704 = vmul.f32 %v1656, %v1688
        %v1705 = vmul.f32 %v1657, %v1689
        %v1706 = vmul.f32 %v1658, %v1690
        %v1707 = vmul.f32 %v1659, %v1691
        %v1708 = vmul.f32 %v1660, %v1692
        %v1709 = vmul.f32 %v1661, %v1693
        %v1710 = vmul.f32 %v1662, %v1694
        %v1711 = vpack.c.bf16 %v1696, %v1695
        %v1712 = vpack.c.bf16 %v1698, %v1697
        %v1713 = vpack.c.bf16 %v1700, %v1699
        %v1714 = vpack.c.bf16 %v1702, %v1701
        %v1715 = vpack.c.bf16 %v1704, %v1703
        %v1716 = vpack.c.bf16 %v1706, %v1705
        %v1717 = vpack.c.bf16 %v1708, %v1707
        %v1718 = vpack.c.bf16 %v1710, %v1709
        %v1719 = vld [vmem:[#allocation8] sm:$0xff]
        %v1720 = vld [vmem:[#allocation8 + $0x8] sm:$0xff]
        %v1721 = vld [vmem:[#allocation8 + $0x10] sm:$0xff]
        %v1722 = vld [vmem:[#allocation8 + $0x18] sm:$0xff]
        %v1723 = vld [vmem:[#allocation8 + $0x20] sm:$0xff]
        %v1724 = vld [vmem:[#allocation8 + $0x28] sm:$0xff]
        %v1725 = vld [vmem:[#allocation8 + $0x30] sm:$0xff]
        %v1726 = vld [vmem:[#allocation8 + $0x38] sm:$0xff]
        %v1727 = vld [vmem:[#allocation8 + $0x40] sm:$0xff]
        %v1728 = vld [vmem:[#allocation8 + $0x48] sm:$0xff]
        %v1729 = vld [vmem:[#allocation8 + $0x50] sm:$0xff]
        %v1730 = vld [vmem:[#allocation8 + $0x58] sm:$0xff]
        %v1731 = vld [vmem:[#allocation8 + $0x60] sm:$0xff]
        %v1732 = vld [vmem:[#allocation8 + $0x68] sm:$0xff]
        %v1733 = vld [vmem:[#allocation8 + $0x70] sm:$0xff]
        %v1734 = vld [vmem:[#allocation8 + $0x78] sm:$0xff]
        %v1735 = vld [vmem:[%s4 + $0x5] sm:$0x3]
        %v1737 = vlaneseq
        %v1738 = vshrl.u32 %v1737, 7
        %v1739 = vsub.s32 0, %v1738
        %v1740 = vrot.slane %v1735, %v1739
        %v1741 = vlaneseq
        %v1742 = vshrl.u32 %v1741, 7
        %v1743 = vsub.s32 1, %v1742
        %v1744 = vrot.slane %v1735, %v1743
        %v1763 = vunpack.c.l.b16 %v1719
        %v1764 = vunpack.c.h.b16 %v1719
        %v1765 = vunpack.c.l.b16 %v1720
        %v1766 = vunpack.c.h.b16 %v1720
        %v1767 = vunpack.c.l.b16 %v1721
        %v1768 = vunpack.c.h.b16 %v1721
        %v1769 = vunpack.c.l.b16 %v1722
        %v1770 = vunpack.c.h.b16 %v1722
        %v1771 = vunpack.c.l.b16 %v1723
        %v1772 = vunpack.c.h.b16 %v1723
        %v1773 = vunpack.c.l.b16 %v1724
        %v1774 = vunpack.c.h.b16 %v1724
        %v1775 = vunpack.c.l.b16 %v1725
        %v1776 = vunpack.c.h.b16 %v1725
        %v1777 = vunpack.c.l.b16 %v1726
        %v1778 = vunpack.c.h.b16 %v1726
        %v1779 = vunpack.c.l.b16 %v1727
        %v1780 = vunpack.c.h.b16 %v1727
        %v1781 = vunpack.c.l.b16 %v1728
        %v1782 = vunpack.c.h.b16 %v1728
        %v1783 = vunpack.c.l.b16 %v1729
        %v1784 = vunpack.c.h.b16 %v1729
        %v1785 = vunpack.c.l.b16 %v1730
        %v1786 = vunpack.c.h.b16 %v1730
        %v1787 = vunpack.c.l.b16 %v1731
        %v1788 = vunpack.c.h.b16 %v1731
        %v1789 = vunpack.c.l.b16 %v1732
        %v1790 = vunpack.c.h.b16 %v1732
        %v1791 = vunpack.c.l.b16 %v1733
        %v1792 = vunpack.c.h.b16 %v1733
        %v1793 = vunpack.c.l.b16 %v1734
        %v1794 = vunpack.c.h.b16 %v1734
        %v1795 = vpack.c.b16 %v1765, %v1763
        %v1796 = vpack.c.b16 %v1766, %v1764
        %v1797 = vpack.c.b16 %v1769, %v1767
        %v1798 = vpack.c.b16 %v1770, %v1768
        %v1799 = vpack.c.b16 %v1773, %v1771
        %v1800 = vpack.c.b16 %v1774, %v1772
        %v1801 = vpack.c.b16 %v1777, %v1775
        %v1802 = vpack.c.b16 %v1778, %v1776
        %v1803 = vpack.c.b16 %v1781, %v1779
        %v1804 = vpack.c.b16 %v1782, %v1780
        %v1805 = vpack.c.b16 %v1785, %v1783
        %v1806 = vpack.c.b16 %v1786, %v1784
        %v1807 = vpack.c.b16 %v1789, %v1787
        %v1808 = vpack.c.b16 %v1790, %v1788
        %v1809 = vpack.c.b16 %v1793, %v1791
        %v1810 = vpack.c.b16 %v1794, %v1792
        %1827 = vmatprep.subr.bf16.mxu0 %v1796
        %1828 = vmatpush1.bf16.msra.mxu0 %v1795
        %1829 = vmatprep.subr.bf16.mxu0 %v1798
        %1830 = vmatpush1.bf16.msra.mxu0 %v1797
        %1831 = vmatprep.subr.bf16.mxu0 %v1800
        %1832 = vmatpush1.bf16.msra.mxu0 %v1799
        %1833 = vmatprep.subr.bf16.mxu0 %v1802
        %1834 = vmatpush1.bf16.msra.mxu0 %v1801
        %1835 = vmatprep.subr.bf16.mxu0 %v1804
        %1836 = vmatpush1.bf16.msra.mxu0 %v1803
        %1837 = vmatprep.subr.bf16.mxu0 %v1806
        %1838 = vmatpush1.bf16.msra.mxu0 %v1805
        %1839 = vmatprep.subr.bf16.mxu0 %v1808
        %1840 = vmatpush1.bf16.msra.mxu0 %v1807
        %1841 = vmatprep.subr.bf16.mxu0 %v1810
        %1842 = vmatpush1.bf16.msra.mxu0 %v1809
        %1843 = vmatprep.subr.bf16.mxu0 0
        %1844 = vmatpush1.bf16.msra.mxu0 0
        %1845 = vmatprep.subr.bf16.mxu0 0
        %1846 = vmatpush1.bf16.msra.mxu0 0
        %1847 = vmatprep.subr.bf16.mxu0 0
        %1848 = vmatpush1.bf16.msra.mxu0 0
        %1849 = vmatprep.subr.bf16.mxu0 0
        %1850 = vmatpush1.bf16.msra.mxu0 0
        %1851 = vmatprep.subr.bf16.mxu0 0
        %1852 = vmatpush1.bf16.msra.mxu0 0
        %1853 = vmatprep.subr.bf16.mxu0 0
        %1854 = vmatpush1.bf16.msra.mxu0 0
        %1855 = vmatprep.subr.bf16.mxu0 0
        %1856 = vmatpush1.bf16.msra.mxu0 0
        %1857 = vmatprep.subr.bf16.mxu0 0
        %1858 = vmatpush1.bf16.msra.mxu0 0
        %1859 = vmatprep.mubr.bf16.mxu0 0
        %1860 = vmatmul.mubr.bf16.gmra.mrb[0].mxu0 %v1711
        %v1861 = vpop.f32.mrb[0].mxu0
        %v1862 = vadd.f32 %v1740, %v1861
        %v1863 = vpop.f32.mrb[0].mxu0
        %v1864 = vadd.f32 %v1744, %v1863
        %v1865 = vpop.f32.mrb[0].mxu0
        %v1866 = vadd.f32 %v1740, %v1865
        %v1867 = vpop.f32.mrb[0].mxu0
        %v1868 = vadd.f32 %v1744, %v1867
        %1869 = vmatprep.mubr.bf16.mxu0 0
        %1870 = vmatmul.mubr.bf16.gmra.mrb[0].mxu0 %v1712
        %v1871 = vpop.f32.mrb[0].mxu0
        %v1872 = vadd.f32 %v1740, %v1871
        %v1873 = vpop.f32.mrb[0].mxu0
        %v1874 = vadd.f32 %v1744, %v1873
        %v1875 = vpop.f32.mrb[0].mxu0
        %v1876 = vadd.f32 %v1740, %v1875
        %v1877 = vpop.f32.mrb[0].mxu0
        %v1878 = vadd.f32 %v1744, %v1877
        %1879 = vmatprep.mubr.bf16.mxu0 0
        %1880 = vmatmul.mubr.bf16.gmra.mrb[0].mxu0 %v1713
        %v1881 = vpop.f32.mrb[0].mxu0
        %v1882 = vadd.f32 %v1740, %v1881
        %v1883 = vpop.f32.mrb[0].mxu0
        %v1884 = vadd.f32 %v1744, %v1883
        %v1885 = vpop.f32.mrb[0].mxu0
        %v1886 = vadd.f32 %v1740, %v1885
        %v1887 = vpop.f32.mrb[0].mxu0
        %v1888 = vadd.f32 %v1744, %v1887
        %1889 = vmatprep.mubr.bf16.mxu0 0
        %1890 = vmatmul.mubr.bf16.gmra.mrb[0].mxu0 %v1714
        %v1891 = vpop.f32.mrb[0].mxu0
        %v1892 = vadd.f32 %v1740, %v1891
        %v1893 = vpop.f32.mrb[0].mxu0
        %v1894 = vadd.f32 %v1744, %v1893
        %v1895 = vpop.f32.mrb[0].mxu0
        %v1896 = vadd.f32 %v1740, %v1895
        %v1897 = vpop.f32.mrb[0].mxu0
        %v1898 = vadd.f32 %v1744, %v1897
        %1899 = vmatprep.mubr.bf16.mxu0 0
        %1900 = vmatmul.mubr.bf16.gmra.mrb[0].mxu0 %v1715
        %v1901 = vpop.f32.mrb[0].mxu0
        %v1902 = vadd.f32 %v1740, %v1901
        %v1903 = vpop.f32.mrb[0].mxu0
        %v1904 = vadd.f32 %v1744, %v1903
        %v1905 = vpop.f32.mrb[0].mxu0
        %v1906 = vadd.f32 %v1740, %v1905
        %v1907 = vpop.f32.mrb[0].mxu0
        %v1908 = vadd.f32 %v1744, %v1907
        %1909 = vmatprep.mubr.bf16.mxu0 0
        %1910 = vmatmul.mubr.bf16.gmra.mrb[0].mxu0 %v1716
        %v1911 = vpop.f32.mrb[0].mxu0
        %v1912 = vadd.f32 %v1740, %v1911
        %v1913 = vpop.f32.mrb[0].mxu0
        %v1914 = vadd.f32 %v1744, %v1913
        %v1915 = vpop.f32.mrb[0].mxu0
        %v1916 = vadd.f32 %v1740, %v1915
        %v1917 = vpop.f32.mrb[0].mxu0
        %v1918 = vadd.f32 %v1744, %v1917
        %1919 = vmatprep.mubr.bf16.mxu0 0
        %1920 = vmatmul.mubr.bf16.gmra.mrb[0].mxu0 %v1717
        %v1921 = vpop.f32.mrb[0].mxu0
        %v1922 = vadd.f32 %v1740, %v1921
        %v1923 = vpop.f32.mrb[0].mxu0
        %v1924 = vadd.f32 %v1744, %v1923
        %v1925 = vpop.f32.mrb[0].mxu0
        %v1926 = vadd.f32 %v1740, %v1925
        %v1927 = vpop.f32.mrb[0].mxu0
        %v1928 = vadd.f32 %v1744, %v1927
        %1929 = vmatprep.mubr.bf16.mxu0 0
        %1930 = vmatmul.mubr.bf16.gmra.mrb[0].mxu0 %v1718
        %v1931 = vpop.f32.mrb[0].mxu0
        %v1932 = vadd.f32 %v1740, %v1931
        %v1933 = vpop.f32.mrb[0].mxu0
        %v1934 = vadd.f32 %v1744, %v1933
        %v1935 = vpop.f32.mrb[0].mxu0
        %v1936 = vadd.f32 %v1740, %v1935
        %v1937 = vpop.f32.mrb[0].mxu0
        %v1938 = vadd.f32 %v1744, %v1937
        %1939 = vdwg.mxu0
        %1940 = vst [vmem:[%s313] sm:$0xff] %v1862
        %1941 = vst [vmem:[%s313 + $0x8] sm:$0xff] %v1864
        %1942 = vst [vmem:[%s313 + $0x18] sm:$0xff] %v1866
        %1943 = vst [vmem:[%s313 + $0x20] sm:$0xff] %v1868
        %1944 = vst [vmem:[%s313 + $0x30] sm:$0xff] %v1872
        %1945 = vst [vmem:[%s313 + $0x38] sm:$0xff] %v1874
        %1946 = vst [vmem:[%s313 + $0x48] sm:$0xff] %v1876
        %1947 = vst [vmem:[%s313 + $0x50] sm:$0xff] %v1878
        %1948 = vst [vmem:[%s313 + $0x60] sm:$0xff] %v1882
        %1949 = vst [vmem:[%s313 + $0x68] sm:$0xff] %v1884
        %1950 = vst [vmem:[%s313 + $0x78] sm:$0xff] %v1886
        %1951 = vst [vmem:[%s313 + $0x80] sm:$0xff] %v1888
        %1952 = vst [vmem:[%s313 + $0x90] sm:$0xff] %v1892
        %1953 = vst [vmem:[%s313 + $0x98] sm:$0xff] %v1894
        %1954 = vst [vmem:[%s313 + $0xa8] sm:$0xff] %v1896
        %1955 = vst [vmem:[%s313 + $0xb0] sm:$0xff] %v1898
        %1956 = vst [vmem:[%s313 + $0xc0] sm:$0xff] %v1902
        %1957 = vst [vmem:[%s313 + $0xc8] sm:$0xff] %v1904
        %1958 = vst [vmem:[%s313 + $0xd8] sm:$0xff] %v1906
        %1959 = vst [vmem:[%s313 + $0xe0] sm:$0xff] %v1908
        %1960 = vst [vmem:[%s313 + $0xf0] sm:$0xff] %v1912
        %1961 = vst [vmem:[%s313 + $0xf8] sm:$0xff] %v1914
        %1962 = vst [vmem:[%s313 + $0x108] sm:$0xff] %v1916
        %1963 = vst [vmem:[%s313 + $0x110] sm:$0xff] %v1918
        %1964 = vst [vmem:[%s313 + $0x120] sm:$0xff] %v1922
        %1965 = vst [vmem:[%s313 + $0x128] sm:$0xff] %v1924
        %1966 = vst [vmem:[%s313 + $0x138] sm:$0xff] %v1926
        %1967 = vst [vmem:[%s313 + $0x140] sm:$0xff] %v1928
        %1968 = vst [vmem:[%s313 + $0x150] sm:$0xff] %v1932
        %1969 = vst [vmem:[%s313 + $0x158] sm:$0xff] %v1934
        %1970 = vst [vmem:[%s313 + $0x168] sm:$0xff] %v1936
        %1971 = vst [vmem:[%s313 + $0x170] sm:$0xff] %v1938
        %vm1972 = vcmask 523264
        %1973 = vst.msk [vmem:[%s313 + $0x10] sm:$0xff] %vm1972, %v1016
        %1974 = vst.msk [vmem:[%s313 + $0x28] sm:$0xff] %vm1972, %v1019
        %1975 = vst.msk [vmem:[%s313 + $0x40] sm:$0xff] %vm1972, %v1024
        %1976 = vst.msk [vmem:[%s313 + $0x58] sm:$0xff] %vm1972, %v1027
        %1977 = vst.msk [vmem:[%s313 + $0x70] sm:$0xff] %vm1972, %v1032
        %1978 = vst.msk [vmem:[%s313 + $0x88] sm:$0xff] %vm1972, %v1035
        %1979 = vst.msk [vmem:[%s313 + $0xa0] sm:$0xff] %vm1972, %v1040
        %1980 = vst.msk [vmem:[%s313 + $0xb8] sm:$0xff] %vm1972, %v1043
        %1981 = vst.msk [vmem:[%s313 + $0xd0] sm:$0xff] %vm1972, %v1048
        %1982 = vst.msk [vmem:[%s313 + $0xe8] sm:$0xff] %vm1972, %v1051
        %1983 = vst.msk [vmem:[%s313 + $0x100] sm:$0xff] %vm1972, %v1056
        %1984 = vst.msk [vmem:[%s313 + $0x118] sm:$0xff] %vm1972, %v1059
        %1985 = vst.msk [vmem:[%s313 + $0x130] sm:$0xff] %vm1972, %v1064
        %1986 = vst.msk [vmem:[%s313 + $0x148] sm:$0xff] %vm1972, %v1067
        %1987 = vst.msk [vmem:[%s313 + $0x160] sm:$0xff] %vm1972, %v1072
        %1988 = vst.msk [vmem:[%s313 + $0x178] sm:$0xff] %vm1972, %v1075
        %2005 = vrot.lane.b32.xlu0 %v1238, 64
        %v2006 = vpop.permute.xlu0 %2005
        %2007 = vrot.lane.b32.xlu0 %v1239, 64
        %v2008 = vpop.permute.xlu0 %2007
        %2009 = vrot.lane.b32.xlu0 %v1240, 64
        %v2010 = vpop.permute.xlu0 %2009
        %2011 = vrot.lane.b32.xlu0 %v1241, 64
        %v2012 = vpop.permute.xlu0 %2011
        %2013 = vrot.lane.b32.xlu0 %v1242, 64
        %v2014 = vpop.permute.xlu0 %2013
        %2015 = vrot.lane.b32.xlu0 %v1243, 64
        %v2016 = vpop.permute.xlu0 %2015
        %2017 = vrot.lane.b32.xlu0 %v1244, 64
        %v2018 = vpop.permute.xlu0 %2017
        %2019 = vrot.lane.b32.xlu0 %v1245, 64
        %v2020 = vpop.permute.xlu0 %2019
        %2021 = vrot.lane.b32.xlu0 %v1246, 64
        %v2022 = vpop.permute.xlu0 %2021
        %2023 = vrot.lane.b32.xlu0 %v1247, 64
        %v2024 = vpop.permute.xlu0 %2023
        %2025 = vrot.lane.b32.xlu0 %v1248, 64
        %v2026 = vpop.permute.xlu0 %2025
        %2027 = vrot.lane.b32.xlu0 %v1249, 64
        %v2028 = vpop.permute.xlu0 %2027
        %2029 = vrot.lane.b32.xlu0 %v1250, 64
        %v2030 = vpop.permute.xlu0 %2029
        %2031 = vrot.lane.b32.xlu0 %v1251, 64
        %v2032 = vpop.permute.xlu0 %2031
        %2033 = vrot.lane.b32.xlu0 %v1252, 64
        %v2034 = vpop.permute.xlu0 %2033
        %2035 = vrot.lane.b32.xlu0 %v1253, 64
        %v2036 = vpop.permute.xlu0 %2035
        %vm2053 = vcmask 785920
        %2054 = vst.msk [vmem:[%s313 + $0x10] sm:$0xff] %vm2053, %v2006
        %2055 = vst.msk [vmem:[%s313 + $0x28] sm:$0xff] %vm2053, %v2008
        %2056 = vst.msk [vmem:[%s313 + $0x40] sm:$0xff] %vm2053, %v2010
        %2057 = vst.msk [vmem:[%s313 + $0x58] sm:$0xff] %vm2053, %v2012
        %2058 = vst.msk [vmem:[%s313 + $0x70] sm:$0xff] %vm2053, %v2014
        %2059 = vst.msk [vmem:[%s313 + $0x88] sm:$0xff] %vm2053, %v2016
        %2060 = vst.msk [vmem:[%s313 + $0xa0] sm:$0xff] %vm2053, %v2018
        %2061 = vst.msk [vmem:[%s313 + $0xb8] sm:$0xff] %vm2053, %v2020
        %2062 = vst.msk [vmem:[%s313 + $0xd0] sm:$0xff] %vm2053, %v2022
        %2063 = vst.msk [vmem:[%s313 + $0xe8] sm:$0xff] %vm2053, %v2024
        %2064 = vst.msk [vmem:[%s313 + $0x100] sm:$0xff] %vm2053, %v2026
        %2065 = vst.msk [vmem:[%s313 + $0x118] sm:$0xff] %vm2053, %v2028
        %2066 = vst.msk [vmem:[%s313 + $0x130] sm:$0xff] %vm2053, %v2030
        %2067 = vst.msk [vmem:[%s313 + $0x148] sm:$0xff] %vm2053, %v2032
        %2068 = vst.msk [vmem:[%s313 + $0x160] sm:$0xff] %vm2053, %v2034
        %2069 = vst.msk [vmem:[%s313 + $0x178] sm:$0xff] %vm2053, %v2036
        %vm2070 = vcmask 1048320
        %2071 = vst.msk [vmem:[%s313 + $0x10] sm:$0xff] %vm2070, 0.0
        %2072 = vst.msk [vmem:[%s313 + $0x28] sm:$0xff] %vm2070, 0.0
        %2073 = vst.msk [vmem:[%s313 + $0x40] sm:$0xff] %vm2070, 0.0
        %2074 = vst.msk [vmem:[%s313 + $0x58] sm:$0xff] %vm2070, 0.0
        %2075 = vst.msk [vmem:[%s313 + $0x70] sm:$0xff] %vm2070, 0.0
        %2076 = vst.msk [vmem:[%s313 + $0x88] sm:$0xff] %vm2070, 0.0
        %2077 = vst.msk [vmem:[%s313 + $0xa0] sm:$0xff] %vm2070, 0.0
        %2078 = vst.msk [vmem:[%s313 + $0xb8] sm:$0xff] %vm2070, 0.0
        %2079 = vst.msk [vmem:[%s313 + $0xd0] sm:$0xff] %vm2070, 0.0
        %2080 = vst.msk [vmem:[%s313 + $0xe8] sm:$0xff] %vm2070, 0.0
        %2081 = vst.msk [vmem:[%s313 + $0x100] sm:$0xff] %vm2070, 0.0
        %2082 = vst.msk [vmem:[%s313 + $0x118] sm:$0xff] %vm2070, 0.0
        %2083 = vst.msk [vmem:[%s313 + $0x130] sm:$0xff] %vm2070, 0.0
        %2084 = vst.msk [vmem:[%s313 + $0x148] sm:$0xff] %vm2070, 0.0
        %2085 = vst.msk [vmem:[%s313 + $0x160] sm:$0xff] %vm2070, 0.0
        %2086 = vst.msk [vmem:[%s313 + $0x178] sm:$0xff] %vm2070, 0.0
        %s2087 = sand.u32 %s149, 1
        %s2088 = scalar_lea.sflag [#allocation4], %s2087
        %s2089 = sand.u32 %s149, 1
        %s2090 = smul.addr %s2089, 384
        %s2091 = scalar_lea.vmem [#allocation10], %s2090
        // Predicated region
        $region57: #{tpu_custom_call.1} parent=39 // pred_check
          %p2092 = pneg %p159
        $region58: #{tpu_custom_call.1} parent=39 // pred_check_branch
          %2094 = sbr.rel (%p2092) target = $region60
        $region59: #{tpu_custom_call.1} parent=39 // pred_region
          %s2095 = smul.u32 16, %s26
          %s2097 = ssub.s32 6144, 6144
          %2098 = vsyncadd %s2088, %s2097
          %s2099 = smul.addr %s2095, 3
          %s2100 = smul.addr %s2099, 128
          %s2101 = scalar_lea.hbm %s5, %s2100
          %s2102 = sshll.u32 %s2091, 4
          %s2103 = int_to_ptr.vmem [resolvable:$true] %s2102
          %2108 = dma.vmem_to_hbm [thread:$0]  %s2103, 6144, %s2101, %s2088, 384, 384, 24
        $region60: #{tpu_custom_call.1} parent=39 // pred_fallthru
          _
      $region40: #{tpu_custom_call.1} parent=5 // pred_fallthru
        _
      %p2109 = scmp.le.s32.totalorder 2, %s21
      // Predicated region
      $region61: #{tpu_custom_call.1} parent=5 // pred_check
        %p2110 = pneg %p2109
      $region62: #{tpu_custom_call.1} parent=5 // pred_check_branch
        %2112 = sbr.rel (%p2110) target = $region64
      $region63: #{tpu_custom_call.1} parent=5 // pred_region
        %s2113 = ssub.s32 %s21, 2
        // Predicated region
        $region65: #{tpu_custom_call.1} parent=63 // pred_check
          %p2114 = pneg %p165
        $region66: #{tpu_custom_call.1} parent=63 // pred_check_branch
          %2116 = sbr.rel (%p2114) target = $region68
        $region67: #{tpu_custom_call.1} parent=63 // pred_region
          %s2117 = sand.u32 %s150, 1
          %s2118 = scalar_lea.sflag [#allocation4], %s2117
          %s2119 = sand.u32 %s150, 1
          %s2120 = smul.addr %s2119, 384
          %s2121 = scalar_lea.vmem [#allocation10], %s2120
          %2122 = dma.done %s2118, 6144
        $region68: #{tpu_custom_call.1} parent=63 // pred_fallthru
          _
      $region64: #{tpu_custom_call.1} parent=5 // pred_fallthru
        _
    $region6: #{tpu_custom_call.1} parent=1 // loop_footer
      %s25 = sadd.s32 1, %s21
    $region7: #{tpu_custom_call.1} parent=1 // loop_footer_branch
      %20 = sbr.rel target = $region3
    $region8: #{tpu_custom_call.1} parent=1 // loop_exit
      _
    %2123 = vsyncpa [#allocation3], 1
    %s2124 = scalar_lea.sflag [#allocation3], 1
    %2125 = vsyncpa %s2124, 1
    %2126 = vsyncpa [#allocation6], 1
    %s2127 = scalar_lea.sflag [#allocation6], 1
    %2128 = vsyncpa %s2127, 1
    %2129 = vsyncpa [#allocation9], 1
    %2130 = vsyncpa [#allocation4], 1
    %s2131 = scalar_lea.sflag [#allocation4], 1
    %2132 = vsyncpa %s2131, 1

</llo_original>
